<compile_context>
chip_gen: v7x
topology: tpu7x:2x2x1
jax: 0.10.0
libtpu: 0.0.40
codegen_flags: <defaults>
</compile_context>

<pallas_src>
import functools

import jax
import jax.numpy as jnp
from jax.experimental import pallas as pl
from jax.experimental.pallas import tpu as pltpu


# ----------------------------------------------------------------------------
# In-kernel helpers (pure jnp on values already resident in vregs)
# ----------------------------------------------------------------------------
def _normalize_adj(a):
    """preprocess_adj on a (K, K) block-diagonal adjacency slab.

    Matches the reference exactly: D comes from ROW sums of A_hat and is used
    on BOTH sides (D^-1/2 A_hat D^-1/2); inf -> 0 guard kept."""
    k = a.shape[0]
    eye = jnp.eye(k, dtype=jnp.float32)
    a_hat = a + eye
    deg = jnp.sum(a_hat, axis=1, keepdims=True)              # (K, 1) row sums
    dinv = jnp.where(deg > 0.0, jax.lax.rsqrt(deg), 0.0)
    dinv_t = jnp.sum(dinv * eye, axis=0, keepdims=True)      # (1, K) same values
    return a_hat * dinv * dinv_t


def _run_gcn(a_norm, x, w_all, num_layer):
    """GCN stack: per layer act(A_norm @ X @ W); ReLU hidden, Sigmoid output."""
    for layer in range(num_layer):
        w = w_all[layer]
        h = jnp.dot(a_norm,
                    jnp.dot(x, w, preferred_element_type=jnp.float32),
                    preferred_element_type=jnp.float32)
        if layer == num_layer - 1:
            # sigmoid via exp (EUP) + approximate reciprocal (EUP slot)
            x = pl.reciprocal(1.0 + jnp.exp(-h), approx=True)
        else:
            x = jnp.maximum(h, 0.0)
        # TODO(synk): nn.Dropout is identity in eval mode; not modeled here.
    return x


def _coord_mil(seq, pemb, cw, cb, mwc, mwp, mb):
    """relu(seq @ Wc + bc) -> model_input_linear.

    The K=2 coordination matmul is done on the VPU (two broadcast multiplies),
    the concat with player_emb is expressed as a split matmul (never formed)."""
    z = seq[:, 0:1] * cw[0:1, :] + seq[:, 1:2] * cw[1:2, :] + cb
    z = jnp.maximum(z, 0.0)
    return (jnp.dot(z, mwc, preferred_element_type=jnp.float32)
            + jnp.dot(pemb, mwp, preferred_element_type=jnp.float32)
            + mb)


def _write_heads(gcn2, heads_in_scr, heads_ref, head_w, head_b,
                 batch, n_nodes, black_idx, white_idx, hidden):
    """Both prediction heads: one fused MXU push + one store.

    rows 0..B-1  = [black_node | white_node]   (shot-type head input)
    rows B..2B-1 = [final[N-2] | final[N-1]]   (xy head input)"""
    B, N, H = batch, n_nodes, hidden
    bn = B * N
    for b in range(B):
        mrow = b * N            # masked (shot-type) graph block of batch b
        frow = bn + b * N       # final graph block of batch b
        heads_in_scr[b:b + 1, 0:H] = gcn2[mrow + black_idx:mrow + black_idx + 1, :]
        heads_in_scr[b:b + 1, H:2 * H] = gcn2[mrow + white_idx:mrow + white_idx + 1, :]
        heads_in_scr[B + b:B + b + 1, 0:H] = gcn2[frow + N - 2:frow + N - 1, :]
        heads_in_scr[B + b:B + b + 1, H:2 * H] = gcn2[frow + N - 1:frow + N, :]
    heads_ref[...] = (jnp.dot(heads_in_scr[...], head_w,
                              preferred_element_type=jnp.float32)
                      + head_b).astype(heads_ref.dtype)


# ----------------------------------------------------------------------------
# Fused decoder kernels (grid=(1,), everything resident in VMEM)
# ----------------------------------------------------------------------------
def _decoder_kernel_notfirst(
        seq_ref, pemb_ref, enc_ref, adj1_ref, comb_adj_ref,
        cw_ref, cb_ref, mwc_ref, mwp_ref, mb_ref, gcn_w_ref,
        head_w_ref, head_b_ref,
        passed_ref, heads_ref,
        x1_scr, xdup_scr, heads_in_scr,
        *, batch, n_enc, n_nodes, num_layer, black_idx, white_idx, hidden, m_new):
    B, N, H, M = batch, n_nodes, hidden, m_new
    n1 = n_enc + M                      # nodes seen by GCN #1 (= 2*step - 2)
    bn = B * N

    w_all = gcn_w_ref[...]              # (L, H, H) hoisted

    # (1) coordination_transform + model_input_linear (fused)
    init_emb = _coord_mil(seq_ref[...], pemb_ref[...], cw_ref[...], cb_ref[...],
                          mwc_ref[...], mwp_ref[...], mb_ref[...])   # (B*M, H)

    # (2) GCN #1 on [encode ; initial] with the incoming adjacency
    for b in range(B):
        x1_scr[b * n1:b * n1 + n_enc, :] = enc_ref[b * n_enc:(b + 1) * n_enc, :]
        x1_scr[b * n1 + n_enc:(b + 1) * n1, :] = init_emb[b * M:(b + 1) * M, :]
    gcn1 = _run_gcn(_normalize_adj(adj1_ref[...]), x1_scr[...], w_all, num_layer)

    # (3) passed_node_embedding = [encode[:-2] ; gcn1[-4:]]  (kernel output) and
    #     model_input           = [passed ; initial] duplicated once for the
    #     two remaining GCN passes (masked shot-type graph + final graph).
    for b in range(B):
        enc_keep = enc_ref[b * n_enc:b * n_enc + n_enc - 2, :]
        g1_tail = gcn1[(b + 1) * n1 - 4:(b + 1) * n1, :]
        init_b = init_emb[b * M:(b + 1) * M, :]
        passed_ref[b * n1:b * n1 + n_enc - 2, :] = enc_keep
        passed_ref[b * n1 + n_enc - 2:(b + 1) * n1, :] = g1_tail
        for half in range(2):
            r0 = half * bn + b * N
            xdup_scr[r0:r0 + n_enc - 2, :] = enc_keep
            xdup_scr[r0 + n_enc - 2:r0 + n1, :] = g1_tail
            xdup_scr[r0 + n1:r0 + N, :] = init_b

    # (4) masked shot-type GCN + final GCN in ONE block-diagonal pass
    gcn2 = _run_gcn(_normalize_adj(comb_adj_ref[...]), xdup_scr[...], w_all,
                    num_layer)                                       # (2*B*N, H)

    # (5) both heads fused
    _write_heads(gcn2, heads_in_scr, heads_ref, head_w_ref[...], head_b_ref[...],
                 B, N, black_idx, white_idx, H)


def _decoder_kernel_first(
        seq_ref, pemb_ref, enc_ref, comb_adj_ref,
        cw_ref, cb_ref, mwc_ref, mwp_ref, mb_ref, gcn_w_ref,
        head_w_ref, head_b_ref,
        heads_ref,
        xdup_scr, heads_in_scr,
        *, batch, n_nodes, num_layer, black_idx, white_idx, hidden, m_new):
    B, N, H, M = batch, n_nodes, hidden, m_new
    n_enc = N - M
    bn = B * N

    w_all = gcn_w_ref[...]
    init_emb = _coord_mil(seq_ref[...], pemb_ref[...], cw_ref[...], cb_ref[...],
                          mwc_ref[...], mwp_ref[...], mb_ref[...])

    for b in range(B):
        init_b = init_emb[b * M:(b + 1) * M, :]
        for half in range(2):
            r0 = half * bn + b * N
            xdup_scr[r0:r0 + n_enc, :] = enc_ref[b * n_enc:(b + 1) * n_enc, :]
            xdup_scr[r0 + n_enc:r0 + N, :] = init_b

    gcn2 = _run_gcn(_normalize_adj(comb_adj_ref[...]), xdup_scr[...], w_all,
                    num_layer)

    _write_heads(gcn2, heads_in_scr, heads_ref, head_w_ref[...], head_b_ref[...],
                 B, N, black_idx, white_idx, H)


# ----------------------------------------------------------------------------
# JAX-side glue
# ----------------------------------------------------------------------------
def _whole_array_spec(a):
    return pl.BlockSpec(a.shape, lambda i, _z=(0,) * a.ndim: _z)


def _block_diag(blocks):
    """(K, n, n) -> (K*n, K*n) block-diagonal; tiny, constant-folds for the
    data-independent adjacencies."""
    K, n, _ = blocks.shape
    eye = jnp.eye(K, dtype=blocks.dtype)
    return (eye[:, None, :, None] * blocks[:, :, None, :]).reshape(K * n, K * n)


def update_adjacency_matrix(batch_size, step, shot_type_predict=False):
    n = step * 2
    adj = jnp.ones((n, n), dtype=jnp.float32) - jnp.eye(n, dtype=jnp.float32)
    adj = jnp.tile(adj[None, :, :], (batch_size, 1, 1))
    if shot_type_predict:
        idx = (step - 1) * 2 if step % 2 == 0 else (step - 1) * 2 + 1
        adj = adj.at[:, idx, :].set(0.0)
        adj = adj.at[:, :, idx].set(0.0)
    return adj


def decoder_forward(params, player, step, encode_node_embedding, adjacency_matrix,
                    player_A_x, player_A_y, player_B_x, player_B_y,
                    shot_type=None, train=False, first=False):
    B = player.shape[0]
    H = params["gcn_w"].shape[-1]
    num_layer = params["gcn_w"].shape[0]
    head_dim = params["head_w"].shape[1]          # type_num + 10
    type_num = head_dim - 10

    # previous coordinates (B, M, 2), A/B interleaved per timestep
    prev_A = jnp.concatenate((player_A_x[:, :, None], player_A_y[:, :, None]),
                             axis=2).astype(jnp.float32)
    prev_B = jnp.concatenate((player_B_x[:, :, None], player_B_y[:, :, None]),
                             axis=2).astype(jnp.float32)
    prev_seq = jnp.stack((prev_A, prev_B), axis=2).reshape(B, -1, 2)
    M = prev_seq.shape[1]
    assert M == 2, "decoder consumes exactly one (A, B) coordinate pair per step"

    player_emb = params["player_embedding"][player]          # gather stays in JAX
    Dp = player_emb.shape[-1]

    N = 2 * step
    if step % 2 == 0:
        black_idx, white_idx = (step - 1) * 2 + 1, (step - 2) * 2
    else:
        black_idx, white_idx = (step - 2) * 2 + 1, (step - 1) * 2
    # (black_idx / white_idx are never the removed node rm, so the reference's
    #  re-inserted zero row at rm cannot influence any returned tensor.)

    # data-independent adjacencies (constants for static step / batch)
    tmp_adj = update_adjacency_matrix(B, step, shot_type_predict=True)
    final_adj = update_adjacency_matrix(B, step)
    if step % 2 == 0:
        i1, i2 = (step - 2) * 2, (step - 1) * 2 + 1
    else:
        i1, i2 = (step - 1) * 2, (step - 2) * 2 + 1
    final_adj = final_adj.at[:, i1, i2].set(1.0)   # already 1 on a complete graph
    final_adj = final_adj.at[:, i2, i1].set(1.0)   # kept for faithfulness

    # one block-diagonal adjacency drives BOTH remaining GCN passes
    comb_adj = _block_diag(jnp.concatenate((tmp_adj, final_adj), axis=0))

    seq2 = prev_seq.reshape(B * M, 2)
    pemb2 = player_emb.reshape(B * M, Dp).astype(jnp.float32)

    weight_args = (params["coord_w"], params["coord_b"], params["mil_w_c"],
                   params["mil_w_p"], params["mil_b"], params["gcn_w"],
                   params["head_w"], params["head_b"])
    heads_shape = jax.ShapeDtypeStruct((2 * B, head_dim), jnp.float32)

    if not first:
        n_enc = encode_node_embedding.shape[1]
        n1 = n_enc + M                              # nodes seen by GCN #1
        assert n1 == N - 2 and adjacency_matrix.shape[-1] == n1
        enc2 = encode_node_embedding.reshape(B * n_enc, H).astype(jnp.float32)
        adj1_bd = _block_diag(adjacency_matrix.astype(jnp.float32))

        kernel = functools.partial(
            _decoder_kernel_notfirst, batch=B, n_enc=n_enc, n_nodes=N,
            num_layer=num_layer, black_idx=black_idx, white_idx=white_idx,
            hidden=H, m_new=M)
        args = (seq2, pemb2, enc2, adj1_bd, comb_adj) + weight_args
        passed2, heads_out = pl.pallas_call(
            kernel,
            out_shape=(jax.ShapeDtypeStruct((B * n1, H), jnp.float32),
                       heads_shape),
            grid=(1,),
            in_specs=[_whole_array_spec(a) for a in args],
            out_specs=(pl.BlockSpec((B * n1, H), lambda i: (0, 0)),
                       pl.BlockSpec((2 * B, head_dim), lambda i: (0, 0))),
            scratch_shapes=[pltpu.VMEM((B * n1, H), jnp.float32),
                            pltpu.VMEM((2 * B * N, H), jnp.float32),
                            pltpu.VMEM((2 * B, 2 * H), jnp.float32)],
        )(*args)
        passed_node_embedding = passed2.reshape(B, n1, H)
    else:
        n_enc = encode_node_embedding.shape[1]
        assert n_enc + M == N
        enc2 = encode_node_embedding.reshape(B * n_enc, H).astype(jnp.float32)

        kernel = functools.partial(
            _decoder_kernel_first, batch=B, n_nodes=N, num_layer=num_layer,
            black_idx=black_idx, white_idx=white_idx, hidden=H, m_new=M)
        args = (seq2, pemb2, enc2, comb_adj) + weight_args
        heads_out = pl.pallas_call(
            kernel,
            out_shape=heads_shape,
            grid=(1,),
            in_specs=[_whole_array_spec(a) for a in args],
            out_specs=pl.BlockSpec((2 * B, head_dim), lambda i: (0, 0)),
            scratch_shapes=[pltpu.VMEM((2 * B * N, H), jnp.float32),
                            pltpu.VMEM((2 * B, 2 * H), jnp.float32)],
        )(*args)
        passed_node_embedding = encode_node_embedding

    predict_shot_type_logit = heads_out[:B, :type_num]
    predict_xy = heads_out[B:, type_num:].reshape(B, 2, 5)
    return predict_xy, predict_shot_type_logit, final_adj, passed_node_embedding


# ----------------------------------------------------------------------------
# Parameter init + one-time preparation (hoists dtype casts / weight fusion)
# ----------------------------------------------------------------------------
def init_params(key, player_num, player_dim, location_dim, hidden_size,
                type_num, num_layer):
    ks = jax.random.split(key, 10)
    s = 0.1
    return {
        "player_embedding": s * jax.random.normal(ks[0], (player_num, player_dim), jnp.float32),
        "coord_w": s * jax.random.normal(ks[1], (2, location_dim), jnp.float32),
        "coord_b": s * jax.random.normal(ks[2], (location_dim,), jnp.float32),
        "mil_w": s * jax.random.normal(ks[3], (location_dim + player_dim, hidden_size), jnp.float32),
        "mil_b": s * jax.random.normal(ks[4], (hidden_size,), jnp.float32),
        "gcn_w": s * jax.random.normal(ks[5], (num_layer, hidden_size, hidden_size), jnp.float32),
        "pst_w": s * jax.random.normal(ks[6], (hidden_size * 2, type_num), jnp.float32),
        "pst_b": s * jax.random.normal(ks[7], (type_num,), jnp.float32),
        "pxy_w": s * jax.random.normal(ks[8], (hidden_size * 2, 10), jnp.float32),
        "pxy_b": s * jax.random.normal(ks[9], (10,), jnp.float32),
    }


def prepare_decoder_params(raw, location_dim):
    """One-time prep: f32 casts, (1, D) biases, split mil_w, fused head."""
    f32 = jnp.float32
    dl = location_dim
    return {
        "player_embedding": raw["player_embedding"].astype(f32),
        "coord_w": raw["coord_w"].astype(f32),
        "coord_b": raw["coord_b"].reshape(1, -1).astype(f32),
        "mil_w_c": raw["mil_w"][:dl].astype(f32),
        "mil_w_p": raw["mil_w"][dl:].astype(f32),
        "mil_b": raw["mil_b"].reshape(1, -1).astype(f32),
        "gcn_w": raw["gcn_w"].astype(f32),
        "head_w": jnp.concatenate((raw["pst_w"], raw["pxy_w"]), axis=1).astype(f32),
        "head_b": jnp.concatenate((raw["pst_b"], raw["pxy_b"])).reshape(1, -1).astype(f32),
    }


if __name__ == "__main__":
    # small, self-consistent configuration
    player_num, player_dim = 4, 8
    type_num, location_dim = 10, 8
    hidden_size, num_layer = 32, 2
    batch_size, step, T = 2, 4, 1          # step even; 2*step total graph nodes

    key = jax.random.PRNGKey(0)
    k_par, k_pl, k_enc, k_x = jax.random.split(key, 4)
    raw_params = init_params(k_par, player_num, player_dim, location_dim,
                             hidden_size, type_num, num_layer)
    params = prepare_decoder_params(raw_params, location_dim)

    player = jax.random.randint(k_pl, (batch_size, 2 * T), 0, player_num)
    # not-first path: encode has 2*step-4 nodes, incoming adjacency covers
    # encode nodes + 2 new nodes = 2*step-2 nodes (consistent with model_input).
    n_enc = 2 * step - 4
    encode_node_embedding = 0.1 * jax.random.normal(
        k_enc, (batch_size, n_enc, hidden_size), jnp.float32)
    n_adj = n_enc + 2 * T
    adjacency_matrix = jnp.tile(
        (jnp.ones((n_adj, n_adj)) - jnp.eye(n_adj))[None], (batch_size, 1, 1)
    ).astype(jnp.float32)

    cx = jax.random.uniform(k_x, (4, batch_size, T), jnp.float32)
    player_A_x, player_A_y, player_B_x, player_B_y = cx[0], cx[1], cx[2], cx[3]

    fwd = jax.jit(decoder_forward, static_argnames=("step", "train", "first"))
    outs = fwd(params, player,
               step=step,
               encode_node_embedding=encode_node_embedding,
               adjacency_matrix=adjacency_matrix,
               player_A_x=player_A_x, player_A_y=player_A_y,
               player_B_x=player_B_x, player_B_y=player_B_y,
               train=True, first=False)
    outs = jax.block_until_ready(outs)

    predict_xy, shot_logit, new_adj, passed = outs
    assert predict_xy.shape == (batch_size, 2, 5)
    assert shot_logit.shape == (batch_size, type_num)
    assert new_adj.shape == (batch_size, 2 * step, 2 * step)
    assert passed.shape == (batch_size, 2 * step - 2, hidden_size)
    assert bool(jnp.all(jnp.isfinite(predict_xy))) and bool(jnp.all(jnp.isfinite(shot_logit)))
    assert bool(jnp.all(jnp.isfinite(passed)))
    print("KERNEL_OK")
</pallas_src>

<mosaic_0001>
module attributes {stable_mosaic.version = 11 : i64} {
  func.func @_decoder_kernel_notfirst(%arg0: i32, %arg1: memref<4x2xf32, #tpu.memory_space<vmem>>, %arg2: memref<4x8xf32, #tpu.memory_space<vmem>>, %arg3: memref<8x32xf32, #tpu.memory_space<vmem>>, %arg4: memref<12x12xf32, #tpu.memory_space<vmem>>, %arg5: memref<32x32xf32, #tpu.memory_space<vmem>>, %arg6: memref<2x8xf32, #tpu.memory_space<vmem>>, %arg7: memref<1x8xf32, #tpu.memory_space<vmem>>, %arg8: memref<8x32xf32, #tpu.memory_space<vmem>>, %arg9: memref<8x32xf32, #tpu.memory_space<vmem>>, %arg10: memref<1x32xf32, #tpu.memory_space<vmem>>, %arg11: memref<2x32x32xf32, #tpu.memory_space<vmem>>, %arg12: memref<64x20xf32, #tpu.memory_space<vmem>>, %arg13: memref<1x20xf32, #tpu.memory_space<vmem>>, %arg14: memref<12x32xf32, #tpu.memory_space<vmem>>, %arg15: memref<4x20xf32, #tpu.memory_space<vmem>>, %arg16: memref<12x32xf32, #tpu.memory_space<vmem>>, %arg17: memref<32x32xf32, #tpu.memory_space<vmem>>, %arg18: memref<4x64xf32, #tpu.memory_space<vmem>>) attributes {dimension_semantics = [#tpu.dimension_semantics<arbitrary>], iteration_bounds = array<i64: 1>, scalar_prefetch = 0 : i64, scratch_operands = 3 : i64, tpu.core_type = #tpu.core_type<tc>, window_params = [{pipeline_mode = #tpu.pipeline_mode<synchronous>, transform_indices = @transform_0, window_bounds = array<i64: 4, 2>}, {pipeline_mode = #tpu.pipeline_mode<synchronous>, transform_indices = @transform_1, window_bounds = array<i64: 4, 8>}, {pipeline_mode = #tpu.pipeline_mode<synchronous>, transform_indices = @transform_2, window_bounds = array<i64: 8, 32>}, {pipeline_mode = #tpu.pipeline_mode<synchronous>, transform_indices = @transform_3, window_bounds = array<i64: 12, 12>}, {pipeline_mode = #tpu.pipeline_mode<synchronous>, transform_indices = @transform_4, window_bounds = array<i64: 32, 32>}, {pipeline_mode = #tpu.pipeline_mode<synchronous>, transform_indices = @transform_5, window_bounds = array<i64: 2, 8>}, {pipeline_mode = #tpu.pipeline_mode<synchronous>, transform_indices = @transform_6, window_bounds = array<i64: 1, 8>}, {pipeline_mode = #tpu.pipeline_mode<synchronous>, transform_indices = @transform_7, window_bounds = array<i64: 8, 32>}, {pipeline_mode = #tpu.pipeline_mode<synchronous>, transform_indices = @transform_8, window_bounds = array<i64: 8, 32>}, {pipeline_mode = #tpu.pipeline_mode<synchronous>, transform_indices = @transform_9, window_bounds = array<i64: 1, 32>}, {pipeline_mode = #tpu.pipeline_mode<synchronous>, transform_indices = @transform_10, window_bounds = array<i64: 2, 32, 32>}, {pipeline_mode = #tpu.pipeline_mode<synchronous>, transform_indices = @transform_11, window_bounds = array<i64: 64, 20>}, {pipeline_mode = #tpu.pipeline_mode<synchronous>, transform_indices = @transform_12, window_bounds = array<i64: 1, 20>}, {pipeline_mode = #tpu.pipeline_mode<synchronous>, transform_indices = @transform_13, window_bounds = array<i64: 12, 32>}, {pipeline_mode = #tpu.pipeline_mode<synchronous>, transform_indices = @transform_14, window_bounds = array<i64: 4, 20>}]} {
    %c0 = arith.constant 0 : index
    %c0_0 = arith.constant 0 : index
    %c0_1 = arith.constant 0 : index
    %0 = vector.load %arg11[%c0, %c0_0, %c0_1] : memref<2x32x32xf32, #tpu.memory_space<vmem>>, vector<2x32x32xf32>
    %c0_2 = arith.constant 0 : index
    %c0_3 = arith.constant 0 : index
    %1 = vector.load %arg1[%c0_2, %c0_3] : memref<4x2xf32, #tpu.memory_space<vmem>>, vector<4x2xf32>
    %c0_4 = arith.constant 0 : index
    %c0_5 = arith.constant 0 : index
    %2 = vector.load %arg2[%c0_4, %c0_5] : memref<4x8xf32, #tpu.memory_space<vmem>>, vector<4x8xf32>
    %c0_6 = arith.constant 0 : index
    %c0_7 = arith.constant 0 : index
    %3 = vector.load %arg6[%c0_6, %c0_7] : memref<2x8xf32, #tpu.memory_space<vmem>>, vector<2x8xf32>
    %c0_8 = arith.constant 0 : index
    %c0_9 = arith.constant 0 : index
    %4 = vector.load %arg7[%c0_8, %c0_9] : memref<1x8xf32, #tpu.memory_space<vmem>>, vector<1x8xf32>
    %c0_10 = arith.constant 0 : index
    %c0_11 = arith.constant 0 : index
    %5 = vector.load %arg8[%c0_10, %c0_11] : memref<8x32xf32, #tpu.memory_space<vmem>>, vector<8x32xf32>
    %c0_12 = arith.constant 0 : index
    %c0_13 = arith.constant 0 : index
    %6 = vector.load %arg9[%c0_12, %c0_13] : memref<8x32xf32, #tpu.memory_space<vmem>>, vector<8x32xf32>
    %c0_14 = arith.constant 0 : index
    %c0_15 = arith.constant 0 : index
    %7 = vector.load %arg10[%c0_14, %c0_15] : memref<1x32xf32, #tpu.memory_space<vmem>>, vector<1x32xf32>
    %8 = vector.extract_strided_slice %1 {offsets = [0, 0], sizes = [4, 1], strides = [1, 1]} : vector<4x2xf32> to vector<4x1xf32>
    %9 = vector.extract_strided_slice %3 {offsets = [0, 0], sizes = [1, 8], strides = [1, 1]} : vector<2x8xf32> to vector<1x8xf32>
    %10 = vector.broadcast %8 : vector<4x1xf32> to vector<4x8xf32>
    %11 = vector.broadcast %9 : vector<1x8xf32> to vector<4x8xf32>
    %12 = arith.mulf %10, %11 : vector<4x8xf32>
    %13 = vector.extract_strided_slice %1 {offsets = [0, 1], sizes = [4, 1], strides = [1, 1]} : vector<4x2xf32> to vector<4x1xf32>
    %14 = vector.extract_strided_slice %3 {offsets = [1, 0], sizes = [1, 8], strides = [1, 1]} : vector<2x8xf32> to vector<1x8xf32>
    %15 = vector.broadcast %13 : vector<4x1xf32> to vector<4x8xf32>
    %16 = vector.broadcast %14 : vector<1x8xf32> to vector<4x8xf32>
    %17 = arith.mulf %15, %16 : vector<4x8xf32>
    %18 = arith.addf %12, %17 : vector<4x8xf32>
    %19 = vector.broadcast %4 : vector<1x8xf32> to vector<4x8xf32>
    %20 = arith.addf %18, %19 : vector<4x8xf32>
    %cst = arith.constant 0.000000e+00 : f32
    %21 = vector.broadcast %cst : f32 to vector<4x8xf32>
    %22 = arith.maximumf %20, %21 : vector<4x8xf32>
    %cst_16 = arith.constant dense<0.000000e+00> : vector<4x32xf32>
    %23 = tpu.matmul %22, %5, %cst_16 {dimension_numbers = #tpu.dot_dimension_numbers<[1], [0], [0], [1], [0, 0, 1, 1], [], []>} : vector<4x8xf32>, vector<8x32xf32>, vector<4x32xf32> -> vector<4x32xf32>
    %cst_17 = arith.constant dense<0.000000e+00> : vector<4x32xf32>
    %24 = tpu.matmul %2, %6, %cst_17 {dimension_numbers = #tpu.dot_dimension_numbers<[1], [0], [0], [1], [0, 0, 1, 1], [], []>} : vector<4x8xf32>, vector<8x32xf32>, vector<4x32xf32> -> vector<4x32xf32>
    %25 = arith.addf %23, %24 : vector<4x32xf32>
    %26 = vector.broadcast %7 : vector<1x32xf32> to vector<4x32xf32>
    %27 = arith.addf %25, %26 : vector<4x32xf32>
    %c0_18 = arith.constant 0 : index
    %c0_19 = arith.constant 0 : index
    %28 = vector.load %arg3[%c0_18, %c0_19] : memref<8x32xf32, #tpu.memory_space<vmem>>, vector<4x32xf32>
    %c0_20 = arith.constant 0 : index
    %c0_21 = arith.constant 0 : index
    %29 = vector.load %arg16[%c0_20, %c0_21] : memref<12x32xf32, #tpu.memory_space<vmem>>, vector<4x32xf32>
    tpu.vector_store %arg16[%c0_20, %c0_21], %28 {strides = array<i32>} : memref<12x32xf32, #tpu.memory_space<vmem>>, vector<4x32xf32>,
    %30 = vector.extract_strided_slice %27 {offsets = [0, 0], sizes = [2, 32], strides = [1, 1]} : vector<4x32xf32> to vector<2x32xf32>
    %c4 = arith.constant 4 : index
    %c0_22 = arith.constant 0 : index
    %31 = vector.load %arg16[%c4, %c0_22] : memref<12x32xf32, #tpu.memory_space<vmem>>, vector<2x32xf32>
    tpu.vector_store %arg16[%c4, %c0_22], %30 {strides = array<i32>} : memref<12x32xf32, #tpu.memory_space<vmem>>, vector<2x32xf32>,
    %c4_23 = arith.constant 4 : index
    %c0_24 = arith.constant 0 : index
    %32 = vector.load %arg3[%c4_23, %c0_24] : memref<8x32xf32, #tpu.memory_space<vmem>>, vector<4x32xf32>
    %c6 = arith.constant 6 : index
    %c0_25 = arith.constant 0 : index
    %33 = vector.load %arg16[%c6, %c0_25] : memref<12x32xf32, #tpu.memory_space<vmem>>, vector<4x32xf32>
    tpu.vector_store %arg16[%c6, %c0_25], %32 {strides = array<i32>} : memref<12x32xf32, #tpu.memory_space<vmem>>, vector<4x32xf32>,
    %34 = vector.extract_strided_slice %27 {offsets = [2, 0], sizes = [2, 32], strides = [1, 1]} : vector<4x32xf32> to vector<2x32xf32>
    %c10 = arith.constant 10 : index
    %c0_26 = arith.constant 0 : index
    %35 = vector.load %arg16[%c10, %c0_26] : memref<12x32xf32, #tpu.memory_space<vmem>>, vector<2x32xf32>
    tpu.vector_store %arg16[%c10, %c0_26], %34 {strides = array<i32>} : memref<12x32xf32, #tpu.memory_space<vmem>>, vector<2x32xf32>,
    %c0_27 = arith.constant 0 : index
    %c0_28 = arith.constant 0 : index
    %36 = vector.load %arg4[%c0_27, %c0_28] : memref<12x12xf32, #tpu.memory_space<vmem>>, vector<12x12xf32>
    %37 = tpu.iota {dimensions = array<i32: 0>} : vector<12x12xi32>
    %38 = tpu.iota {dimensions = array<i32: 1>} : vector<12x12xi32>
    %c0_i32 = arith.constant 0 : i32
    %39 = vector.broadcast %c0_i32 : i32 to vector<12x12xi32>
    %40 = arith.addi %37, %39 : vector<12x12xi32>
    %41 = arith.cmpi eq, %40, %38 : vector<12x12xi32>
    %42 = arith.extui %41 : vector<12x12xi1> to vector<12x12xi32>
    %43 = arith.sitofp %42 : vector<12x12xi32> to vector<12x12xf32>
    %44 = arith.addf %36, %43 : vector<12x12xf32>
    %cst_29 = arith.constant dense<0.000000e+00> : vector<12xf32>
    %45 = vector.multi_reduction <add>, %44, %cst_29 [1] : vector<12x12xf32> to vector<12xf32>
    %46 = vector.shape_cast %45 : vector<12xf32> to vector<12x1xf32>
    %cst_30 = arith.constant 0.000000e+00 : f32
    %47 = vector.broadcast %cst_30 : f32 to vector<12x1xf32>
    %48 = arith.cmpf ogt, %46, %47 : vector<12x1xf32>
    %49 = math.rsqrt %46 : vector<12x1xf32>
    %cst_31 = arith.constant 0.000000e+00 : f32
    %50 = vector.broadcast %cst_31 : f32 to vector<12x1xf32>
    %51 = arith.select %48, %49, %50 : vector<12x1xi1>, vector<12x1xf32>
    %52 = vector.broadcast %51 : vector<12x1xf32> to vector<12x12xf32>
    %53 = arith.mulf %52, %43 : vector<12x12xf32>
    %cst_32 = arith.constant dense<0.000000e+00> : vector<12xf32>
    %54 = vector.multi_reduction <add>, %53, %cst_32 [0] : vector<12x12xf32> to vector<12xf32>
    %55 = vector.shape_cast %54 : vector<12xf32> to vector<1x12xf32>
    %56 = vector.broadcast %51 : vector<12x1xf32> to vector<12x12xf32>
    %57 = arith.mulf %44, %56 : vector<12x12xf32>
    %58 = vector.broadcast %55 : vector<1x12xf32> to vector<12x12xf32>
    %59 = arith.mulf %57, %58 : vector<12x12xf32>
    %c0_33 = arith.constant 0 : index
    %c0_34 = arith.constant 0 : index
    %60 = vector.load %arg16[%c0_33, %c0_34] : memref<12x32xf32, #tpu.memory_space<vmem>>, vector<12x32xf32>
    %61 = vector.extract_strided_slice %0 {offsets = [0, 0, 0], sizes = [1, 32, 32], strides = [1, 1, 1]} : vector<2x32x32xf32> to vector<1x32x32xf32>
    %62 = vector.shape_cast %61 : vector<1x32x32xf32> to vector<32x32xf32>
    %cst_35 = arith.constant dense<0.000000e+00> : vector<12x32xf32>
    %63 = tpu.matmul %60, %62, %cst_35 {dimension_numbers = #tpu.dot_dimension_numbers<[1], [0], [0], [1], [0, 0, 1, 1], [], []>} : vector<12x32xf32>, vector<32x32xf32>, vector<12x32xf32> -> vector<12x32xf32>
    %cst_36 = arith.constant dense<0.000000e+00> : vector<12x32xf32>
    %64 = tpu.matmul %59, %63, %cst_36 {dimension_numbers = #tpu.dot_dimension_numbers<[1], [0], [0], [1], [0, 0, 1, 1], [], []>} : vector<12x12xf32>, vector<12x32xf32>, vector<12x32xf32> -> vector<12x32xf32>
    %cst_37 = arith.constant 0.000000e+00 : f32
    %65 = vector.broadcast %cst_37 : f32 to vector<12x32xf32>
    %66 = arith.maximumf %64, %65 : vector<12x32xf32>
    %67 = vector.extract_strided_slice %0 {offsets = [1, 0, 0], sizes = [1, 32, 32], strides = [1, 1, 1]} : vector<2x32x32xf32> to vector<1x32x32xf32>
    %68 = vector.shape_cast %67 : vector<1x32x32xf32> to vector<32x32xf32>
    %cst_38 = arith.constant dense<0.000000e+00> : vector<12x32xf32>
    %69 = tpu.matmul %66, %68, %cst_38 {dimension_numbers = #tpu.dot_dimension_numbers<[1], [0], [0], [1], [0, 0, 1, 1], [], []>} : vector<12x32xf32>, vector<32x32xf32>, vector<12x32xf32> -> vector<12x32xf32>
    %cst_39 = arith.constant dense<0.000000e+00> : vector<12x32xf32>
    %70 = tpu.matmul %59, %69, %cst_39 {dimension_numbers = #tpu.dot_dimension_numbers<[1], [0], [0], [1], [0, 0, 1, 1], [], []>} : vector<12x12xf32>, vector<12x32xf32>, vector<12x32xf32> -> vector<12x32xf32>
    %cst_40 = arith.constant 0.000000e+00 : f32
    %71 = vector.broadcast %cst_40 : f32 to vector<12x32xf32>
    %72 = arith.subf %71, %70 : vector<12x32xf32>
    %73 = math.exp %72 : vector<12x32xf32>
    %cst_41 = arith.constant 1.000000e+00 : f32
    %74 = vector.broadcast %cst_41 : f32 to vector<12x32xf32>
    %75 = arith.addf %74, %73 : vector<12x32xf32>
    %76 = tpu.reciprocal %75 {approx = true} : vector<12x32xf32> -> vector<12x32xf32>
    %c0_42 = arith.constant 0 : index
    %c0_43 = arith.constant 0 : index
    %77 = vector.load %arg3[%c0_42, %c0_43] : memref<8x32xf32, #tpu.memory_space<vmem>>, vector<2x32xf32>
    %78 = vector.extract_strided_slice %76 {offsets = [2, 0], sizes = [4, 32], strides = [1, 1]} : vector<12x32xf32> to vector<4x32xf32>
    %79 = vector.extract_strided_slice %27 {offsets = [0, 0], sizes = [2, 32], strides = [1, 1]} : vector<4x32xf32> to vector<2x32xf32>
    %c0_44 = arith.constant 0 : index
    %c0_45 = arith.constant 0 : index
    %80 = vector.load %arg14[%c0_44, %c0_45] : memref<12x32xf32, #tpu.memory_space<vmem>>, vector<2x32xf32>
    tpu.vector_store %arg14[%c0_44, %c0_45], %77 {strides = array<i32>} : memref<12x32xf32, #tpu.memory_space<vmem>>, vector<2x32xf32>,
    %c2 = arith.constant 2 : index
    %c0_46 = arith.constant 0 : index
    %81 = vector.load %arg14[%c2, %c0_46] : memref<12x32xf32, #tpu.memory_space<vmem>>, vector<4x32xf32>
    tpu.vector_store %arg14[%c2, %c0_46], %78 {strides = array<i32>} : memref<12x32xf32, #tpu.memory_space<vmem>>, vector<4x32xf32>,
    %c0_47 = arith.constant 0 : index
    %c0_48 = arith.constant 0 : index
    %82 = vector.load %arg17[%c0_47, %c0_48] : memref<32x32xf32, #tpu.memory_space<vmem>>, vector<2x32xf32>
    tpu.vector_store %arg17[%c0_47, %c0_48], %77 {strides = array<i32>} : memref<32x32xf32, #tpu.memory_space<vmem>>, vector<2x32xf32>,
    %c2_49 = arith.constant 2 : index
    %c0_50 = arith.constant 0 : index
    %83 = vector.load %arg17[%c2_49, %c0_50] : memref<32x32xf32, #tpu.memory_space<vmem>>, vector<4x32xf32>
    tpu.vector_store %arg17[%c2_49, %c0_50], %78 {strides = array<i32>} : memref<32x32xf32, #tpu.memory_space<vmem>>, vector<4x32xf32>,
    %c6_51 = arith.constant 6 : index
    %c0_52 = arith.constant 0 : index
    %84 = vector.load %arg17[%c6_51, %c0_52] : memref<32x32xf32, #tpu.memory_space<vmem>>, vector<2x32xf32>
    tpu.vector_store %arg17[%c6_51, %c0_52], %79 {strides = array<i32>} : memref<32x32xf32, #tpu.memory_space<vmem>>, vector<2x32xf32>,
    %c16 = arith.constant 16 : index
    %c0_53 = arith.constant 0 : index
    %85 = vector.load %arg17[%c16, %c0_53] : memref<32x32xf32, #tpu.memory_space<vmem>>, vector<2x32xf32>
    tpu.vector_store %arg17[%c16, %c0_53], %77 {strides = array<i32>} : memref<32x32xf32, #tpu.memory_space<vmem>>, vector<2x32xf32>,
    %c18 = arith.constant 18 : index
    %c0_54 = arith.constant 0 : index
    %86 = vector.load %arg17[%c18, %c0_54] : memref<32x32xf32, #tpu.memory_space<vmem>>, vector<4x32xf32>
    tpu.vector_store %arg17[%c18, %c0_54], %78 {strides = array<i32>} : memref<32x32xf32, #tpu.memory_space<vmem>>, vector<4x32xf32>,
    %c22 = arith.constant 22 : index
    %c0_55 = arith.constant 0 : index
    %87 = vector.load %arg17[%c22, %c0_55] : memref<32x32xf32, #tpu.memory_space<vmem>>, vector<2x32xf32>
    tpu.vector_store %arg17[%c22, %c0_55], %79 {strides = array<i32>} : memref<32x32xf32, #tpu.memory_space<vmem>>, vector<2x32xf32>,
    %c4_56 = arith.constant 4 : index
    %c0_57 = arith.constant 0 : index
    %88 = vector.load %arg3[%c4_56, %c0_57] : memref<8x32xf32, #tpu.memory_space<vmem>>, vector<2x32xf32>
    %89 = vector.extract_strided_slice %76 {offsets = [8, 0], sizes = [4, 32], strides = [1, 1]} : vector<12x32xf32> to vector<4x32xf32>
    %90 = vector.extract_strided_slice %27 {offsets = [2, 0], sizes = [2, 32], strides = [1, 1]} : vector<4x32xf32> to vector<2x32xf32>
    %c6_58 = arith.constant 6 : index
    %c0_59 = arith.constant 0 : index
    %91 = vector.load %arg14[%c6_58, %c0_59] : memref<12x32xf32, #tpu.memory_space<vmem>>, vector<2x32xf32>
    tpu.vector_store %arg14[%c6_58, %c0_59], %88 {strides = array<i32>} : memref<12x32xf32, #tpu.memory_space<vmem>>, vector<2x32xf32>,
    %c8 = arith.constant 8 : index
    %c0_60 = arith.constant 0 : index
    %92 = vector.load %arg14[%c8, %c0_60] : memref<12x32xf32, #tpu.memory_space<vmem>>, vector<4x32xf32>
    tpu.vector_store %arg14[%c8, %c0_60], %89 {strides = array<i32>} : memref<12x32xf32, #tpu.memory_space<vmem>>, vector<4x32xf32>,
    %c8_61 = arith.constant 8 : index
    %c0_62 = arith.constant 0 : index
    %93 = vector.load %arg17[%c8_61, %c0_62] : memref<32x32xf32, #tpu.memory_space<vmem>>, vector<2x32xf32>
    tpu.vector_store %arg17[%c8_61, %c0_62], %88 {strides = array<i32>} : memref<32x32xf32, #tpu.memory_space<vmem>>, vector<2x32xf32>,
    %c10_63 = arith.constant 10 : index
    %c0_64 = arith.constant 0 : index
    %94 = vector.load %arg17[%c10_63, %c0_64] : memref<32x32xf32, #tpu.memory_space<vmem>>, vector<4x32xf32>
    tpu.vector_store %arg17[%c10_63, %c0_64], %89 {strides = array<i32>} : memref<32x32xf32, #tpu.memory_space<vmem>>, vector<4x32xf32>,
    %c14 = arith.constant 14 : index
    %c0_65 = arith.constant 0 : index
    %95 = vector.load %arg17[%c14, %c0_65] : memref<32x32xf32, #tpu.memory_space<vmem>>, vector<2x32xf32>
    tpu.vector_store %arg17[%c14, %c0_65], %90 {strides = array<i32>} : memref<32x32xf32, #tpu.memory_space<vmem>>, vector<2x32xf32>,
    %c24 = arith.constant 24 : index
    %c0_66 = arith.constant 0 : index
    %96 = vector.load %arg17[%c24, %c0_66] : memref<32x32xf32, #tpu.memory_space<vmem>>, vector<2x32xf32>
    tpu.vector_store %arg17[%c24, %c0_66], %88 {strides = array<i32>} : memref<32x32xf32, #tpu.memory_space<vmem>>, vector<2x32xf32>,
    %c26 = arith.constant 26 : index
    %c0_67 = arith.constant 0 : index
    %97 = vector.load %arg17[%c26, %c0_67] : memref<32x32xf32, #tpu.memory_space<vmem>>, vector<4x32xf32>
    tpu.vector_store %arg17[%c26, %c0_67], %89 {strides = array<i32>} : memref<32x32xf32, #tpu.memory_space<vmem>>, vector<4x32xf32>,
    %c30 = arith.constant 30 : index
    %c0_68 = arith.constant 0 : index
    %98 = vector.load %arg17[%c30, %c0_68] : memref<32x32xf32, #tpu.memory_space<vmem>>, vector<2x32xf32>
    tpu.vector_store %arg17[%c30, %c0_68], %90 {strides = array<i32>} : memref<32x32xf32, #tpu.memory_space<vmem>>, vector<2x32xf32>,
    %c0_69 = arith.constant 0 : index
    %c0_70 = arith.constant 0 : index
    %99 = vector.load %arg5[%c0_69, %c0_70] : memref<32x32xf32, #tpu.memory_space<vmem>>, vector<32x32xf32>
    %100 = tpu.iota {dimensions = array<i32: 0>} : vector<32x32xi32>
    %101 = tpu.iota {dimensions = array<i32: 1>} : vector<32x32xi32>
    %c0_i32_71 = arith.constant 0 : i32
    %102 = vector.broadcast %c0_i32_71 : i32 to vector<32x32xi32>
    %103 = arith.addi %100, %102 : vector<32x32xi32>
    %104 = arith.cmpi eq, %103, %101 : vector<32x32xi32>
    %105 = arith.extui %104 : vector<32x32xi1> to vector<32x32xi32>
    %106 = arith.sitofp %105 : vector<32x32xi32> to vector<32x32xf32>
    %107 = arith.addf %99, %106 : vector<32x32xf32>
    %cst_72 = arith.constant dense<0.000000e+00> : vector<32xf32>
    %108 = vector.multi_reduction <add>, %107, %cst_72 [1] : vector<32x32xf32> to vector<32xf32>
    %109 = vector.shape_cast %108 : vector<32xf32> to vector<32x1xf32>
    %cst_73 = arith.constant 0.000000e+00 : f32
    %110 = vector.broadcast %cst_73 : f32 to vector<32x1xf32>
    %111 = arith.cmpf ogt, %109, %110 : vector<32x1xf32>
    %112 = math.rsqrt %109 : vector<32x1xf32>
    %cst_74 = arith.constant 0.000000e+00 : f32
    %113 = vector.broadcast %cst_74 : f32 to vector<32x1xf32>
    %114 = arith.select %111, %112, %113 : vector<32x1xi1>, vector<32x1xf32>
    %115 = vector.broadcast %114 : vector<32x1xf32> to vector<32x32xf32>
    %116 = arith.mulf %115, %106 : vector<32x32xf32>
    %cst_75 = arith.constant dense<0.000000e+00> : vector<32xf32>
    %117 = vector.multi_reduction <add>, %116, %cst_75 [0] : vector<32x32xf32> to vector<32xf32>
    %118 = vector.shape_cast %117 : vector<32xf32> to vector<1x32xf32>
    %119 = vector.broadcast %114 : vector<32x1xf32> to vector<32x32xf32>
    %120 = arith.mulf %107, %119 : vector<32x32xf32>
    %121 = vector.broadcast %118 : vector<1x32xf32> to vector<32x32xf32>
    %122 = arith.mulf %120, %121 : vector<32x32xf32>
    %c0_76 = arith.constant 0 : index
    %c0_77 = arith.constant 0 : index
    %123 = vector.load %arg17[%c0_76, %c0_77] : memref<32x32xf32, #tpu.memory_space<vmem>>, vector<32x32xf32>
    %124 = vector.extract_strided_slice %0 {offsets = [0, 0, 0], sizes = [1, 32, 32], strides = [1, 1, 1]} : vector<2x32x32xf32> to vector<1x32x32xf32>
    %125 = vector.shape_cast %124 : vector<1x32x32xf32> to vector<32x32xf32>
    %cst_78 = arith.constant dense<0.000000e+00> : vector<32x32xf32>
    %126 = tpu.matmul %123, %125, %cst_78 {dimension_numbers = #tpu.dot_dimension_numbers<[1], [0], [0], [1], [0, 0, 1, 1], [], []>} : vector<32x32xf32>, vector<32x32xf32>, vector<32x32xf32> -> vector<32x32xf32>
    %cst_79 = arith.constant dense<0.000000e+00> : vector<32x32xf32>
    %127 = tpu.matmul %122, %126, %cst_79 {dimension_numbers = #tpu.dot_dimension_numbers<[1], [0], [0], [1], [0, 0, 1, 1], [], []>} : vector<32x32xf32>, vector<32x32xf32>, vector<32x32xf32> -> vector<32x32xf32>
    %cst_80 = arith.constant 0.000000e+00 : f32
    %128 = vector.broadcast %cst_80 : f32 to vector<32x32xf32>
    %129 = arith.maximumf %127, %128 : vector<32x32xf32>
    %130 = vector.extract_strided_slice %0 {offsets = [1, 0, 0], sizes = [1, 32, 32], strides = [1, 1, 1]} : vector<2x32x32xf32> to vector<1x32x32xf32>
    %131 = vector.shape_cast %130 : vector<1x32x32xf32> to vector<32x32xf32>
    %cst_81 = arith.constant dense<0.000000e+00> : vector<32x32xf32>
    %132 = tpu.matmul %129, %131, %cst_81 {dimension_numbers = #tpu.dot_dimension_numbers<[1], [0], [0], [1], [0, 0, 1, 1], [], []>} : vector<32x32xf32>, vector<32x32xf32>, vector<32x32xf32> -> vector<32x32xf32>
    %cst_82 = arith.constant dense<0.000000e+00> : vector<32x32xf32>
    %133 = tpu.matmul %122, %132, %cst_82 {dimension_numbers = #tpu.dot_dimension_numbers<[1], [0], [0], [1], [0, 0, 1, 1], [], []>} : vector<32x32xf32>, vector<32x32xf32>, vector<32x32xf32> -> vector<32x32xf32>
    %cst_83 = arith.constant 0.000000e+00 : f32
    %134 = vector.broadcast %cst_83 : f32 to vector<32x32xf32>
    %135 = arith.subf %134, %133 : vector<32x32xf32>
    %136 = math.exp %135 : vector<32x32xf32>
    %cst_84 = arith.constant 1.000000e+00 : f32
    %137 = vector.broadcast %cst_84 : f32 to vector<32x32xf32>
    %138 = arith.addf %137, %136 : vector<32x32xf32>
    %139 = tpu.reciprocal %138 {approx = true} : vector<32x32xf32> -> vector<32x32xf32>
    %c0_85 = arith.constant 0 : index
    %c0_86 = arith.constant 0 : index
    %140 = vector.load %arg12[%c0_85, %c0_86] : memref<64x20xf32, #tpu.memory_space<vmem>>, vector<64x20xf32>
    %c0_87 = arith.constant 0 : index
    %c0_88 = arith.constant 0 : index
    %141 = vector.load %arg13[%c0_87, %c0_88] : memref<1x20xf32, #tpu.memory_space<vmem>>, vector<1x20xf32>
    %142 = vector.extract_strided_slice %139 {offsets = [7, 0], sizes = [1, 32], strides = [1, 1]} : vector<32x32xf32> to vector<1x32xf32>
    %c0_89 = arith.constant 0 : index
    %c0_90 = arith.constant 0 : index
    %143 = vector.load %arg18[%c0_89, %c0_90] : memref<4x64xf32, #tpu.memory_space<vmem>>, vector<1x32xf32>
    tpu.vector_store %arg18[%c0_89, %c0_90], %142 {strides = array<i32>} : memref<4x64xf32, #tpu.memory_space<vmem>>, vector<1x32xf32>,
    %144 = vector.extract_strided_slice %139 {offsets = [4, 0], sizes = [1, 32], strides = [1, 1]} : vector<32x32xf32> to vector<1x32xf32>
    %c0_91 = arith.constant 0 : index
    %c32 = arith.constant 32 : index
    %145 = vector.load %arg18[%c0_91, %c32] : memref<4x64xf32, #tpu.memory_space<vmem>>, vector<1x32xf32>
    tpu.vector_store %arg18[%c0_91, %c32], %144 {strides = array<i32>} : memref<4x64xf32, #tpu.memory_space<vmem>>, vector<1x32xf32>,
    %146 = vector.extract_strided_slice %139 {offsets = [22, 0], sizes = [1, 32], strides = [1, 1]} : vector<32x32xf32> to vector<1x32xf32>
    %c2_92 = arith.constant 2 : index
    %c0_93 = arith.constant 0 : index
    %147 = vector.load %arg18[%c2_92, %c0_93] : memref<4x64xf32, #tpu.memory_space<vmem>>, vector<1x32xf32>
    tpu.vector_store %arg18[%c2_92, %c0_93], %146 {strides = array<i32>} : memref<4x64xf32, #tpu.memory_space<vmem>>, vector<1x32xf32>,
    %148 = vector.extract_strided_slice %139 {offsets = [23, 0], sizes = [1, 32], strides = [1, 1]} : vector<32x32xf32> to vector<1x32xf32>
    %c2_94 = arith.constant 2 : index
    %c32_95 = arith.constant 32 : index
    %149 = vector.load %arg18[%c2_94, %c32_95] : memref<4x64xf32, #tpu.memory_space<vmem>>, vector<1x32xf32>
    tpu.vector_store %arg18[%c2_94, %c32_95], %148 {strides = array<i32>} : memref<4x64xf32, #tpu.memory_space<vmem>>, vector<1x32xf32>,
    %150 = vector.extract_strided_slice %139 {offsets = [15, 0], sizes = [1, 32], strides = [1, 1]} : vector<32x32xf32> to vector<1x32xf32>
    %c1 = arith.constant 1 : index
    %c0_96 = arith.constant 0 : index
    %151 = vector.load %arg18[%c1, %c0_96] : memref<4x64xf32, #tpu.memory_space<vmem>>, vector<1x32xf32>
    tpu.vector_store %arg18[%c1, %c0_96], %150 {strides = array<i32>} : memref<4x64xf32, #tpu.memory_space<vmem>>, vector<1x32xf32>,
    %152 = vector.extract_strided_slice %139 {offsets = [12, 0], sizes = [1, 32], strides = [1, 1]} : vector<32x32xf32> to vector<1x32xf32>
    %c1_97 = arith.constant 1 : index
    %c32_98 = arith.constant 32 : index
    %153 = vector.load %arg18[%c1_97, %c32_98] : memref<4x64xf32, #tpu.memory_space<vmem>>, vector<1x32xf32>
    tpu.vector_store %arg18[%c1_97, %c32_98], %152 {strides = array<i32>} : memref<4x64xf32, #tpu.memory_space<vmem>>, vector<1x32xf32>,
    %154 = vector.extract_strided_slice %139 {offsets = [30, 0], sizes = [1, 32], strides = [1, 1]} : vector<32x32xf32> to vector<1x32xf32>
    %c3 = arith.constant 3 : index
    %c0_99 = arith.constant 0 : index
    %155 = vector.load %arg18[%c3, %c0_99] : memref<4x64xf32, #tpu.memory_space<vmem>>, vector<1x32xf32>
    tpu.vector_store %arg18[%c3, %c0_99], %154 {strides = array<i32>} : memref<4x64xf32, #tpu.memory_space<vmem>>, vector<1x32xf32>,
    %156 = vector.extract_strided_slice %139 {offsets = [31, 0], sizes = [1, 32], strides = [1, 1]} : vector<32x32xf32> to vector<1x32xf32>
    %c3_100 = arith.constant 3 : index
    %c32_101 = arith.constant 32 : index
    %157 = vector.load %arg18[%c3_100, %c32_101] : memref<4x64xf32, #tpu.memory_space<vmem>>, vector<1x32xf32>
    tpu.vector_store %arg18[%c3_100, %c32_101], %156 {strides = array<i32>} : memref<4x64xf32, #tpu.memory_space<vmem>>, vector<1x32xf32>,
    %c0_102 = arith.constant 0 : index
    %c0_103 = arith.constant 0 : index
    %158 = vector.load %arg18[%c0_102, %c0_103] : memref<4x64xf32, #tpu.memory_space<vmem>>, vector<4x64xf32>
    %cst_104 = arith.constant dense<0.000000e+00> : vector<4x20xf32>
    %159 = tpu.matmul %158, %140, %cst_104 {dimension_numbers = #tpu.dot_dimension_numbers<[1], [0], [0], [1], [0, 0, 1, 1], [], []>} : vector<4x64xf32>, vector<64x20xf32>, vector<4x20xf32> -> vector<4x20xf32>
    %160 = vector.broadcast %141 : vector<1x20xf32> to vector<4x20xf32>
    %161 = arith.addf %159, %160 : vector<4x20xf32>
    %c0_105 = arith.constant 0 : index
    %c0_106 = arith.constant 0 : index
    %162 = vector.load %arg15[%c0_105, %c0_106] : memref<4x20xf32, #tpu.memory_space<vmem>>, vector<4x20xf32>
    tpu.vector_store %arg15[%c0_105, %c0_106], %161 {strides = array<i32>} : memref<4x20xf32, #tpu.memory_space<vmem>>, vector<4x20xf32>,
    return
  }
  func.func @transform_0(%arg0: i32) -> (i32, i32) {
    %c0_i32 = arith.constant 0 : i32
    %c0_i32_0 = arith.constant 0 : i32
    %c0_i32_1 = arith.constant 0 : i32
    return %c0_i32, %c0_i32_0 : i32, i32
  }
  func.func @transform_1(%arg0: i32) -> (i32, i32) {
    %c0_i32 = arith.constant 0 : i32
    %c0_i32_0 = arith.constant 0 : i32
    %c0_i32_1 = arith.constant 0 : i32
    return %c0_i32, %c0_i32_0 : i32, i32
  }
  func.func @transform_2(%arg0: i32) -> (i32, i32) {
    %c0_i32 = arith.constant 0 : i32
    %c0_i32_0 = arith.constant 0 : i32
    %c0_i32_1 = arith.constant 0 : i32
    return %c0_i32, %c0_i32_0 : i32, i32
  }
  func.func @transform_3(%arg0: i32) -> (i32, i32) {
    %c0_i32 = arith.constant 0 : i32
    %c0_i32_0 = arith.constant 0 : i32
    %c0_i32_1 = arith.constant 0 : i32
    return %c0_i32, %c0_i32_0 : i32, i32
  }
  func.func @transform_4(%arg0: i32) -> (i32, i32) {
    %c0_i32 = arith.constant 0 : i32
    %c0_i32_0 = arith.constant 0 : i32
    %c0_i32_1 = arith.constant 0 : i32
    return %c0_i32, %c0_i32_0 : i32, i32
  }
  func.func @transform_5(%arg0: i32) -> (i32, i32) {
    %c0_i32 = arith.constant 0 : i32
    %c0_i32_0 = arith.constant 0 : i32
    %c0_i32_1 = arith.constant 0 : i32
    return %c0_i32, %c0_i32_0 : i32, i32
  }
  func.func @transform_6(%arg0: i32) -> (i32, i32) {
    %c0_i32 = arith.constant 0 : i32
    %c0_i32_0 = arith.constant 0 : i32
    %c0_i32_1 = arith.constant 0 : i32
    return %c0_i32, %c0_i32_0 : i32, i32
  }
  func.func @transform_7(%arg0: i32) -> (i32, i32) {
    %c0_i32 = arith.constant 0 : i32
    %c0_i32_0 = arith.constant 0 : i32
    %c0_i32_1 = arith.constant 0 : i32
    return %c0_i32, %c0_i32_0 : i32, i32
  }
  func.func @transform_8(%arg0: i32) -> (i32, i32) {
    %c0_i32 = arith.constant 0 : i32
    %c0_i32_0 = arith.constant 0 : i32
    %c0_i32_1 = arith.constant 0 : i32
    return %c0_i32, %c0_i32_0 : i32, i32
  }
  func.func @transform_9(%arg0: i32) -> (i32, i32) {
    %c0_i32 = arith.constant 0 : i32
    %c0_i32_0 = arith.constant 0 : i32
    %c0_i32_1 = arith.constant 0 : i32
    return %c0_i32, %c0_i32_0 : i32, i32
  }
  func.func @transform_10(%arg0: i32) -> (i32, i32, i32) {
    %c0_i32 = arith.constant 0 : i32
    %c0_i32_0 = arith.constant 0 : i32
    %c0_i32_1 = arith.constant 0 : i32
    %c0_i32_2 = arith.constant 0 : i32
    return %c0_i32, %c0_i32_0, %c0_i32_1 : i32, i32, i32
  }
  func.func @transform_11(%arg0: i32) -> (i32, i32) {
    %c0_i32 = arith.constant 0 : i32
    %c0_i32_0 = arith.constant 0 : i32
    %c0_i32_1 = arith.constant 0 : i32
    return %c0_i32, %c0_i32_0 : i32, i32
  }
  func.func @transform_12(%arg0: i32) -> (i32, i32) {
    %c0_i32 = arith.constant 0 : i32
    %c0_i32_0 = arith.constant 0 : i32
    %c0_i32_1 = arith.constant 0 : i32
    return %c0_i32, %c0_i32_0 : i32, i32
  }
  func.func @transform_13(%arg0: i32) -> (i32, i32) {
    %c0_i32 = arith.constant 0 : i32
    %c0_i32_0 = arith.constant 0 : i32
    %c0_i32_1 = arith.constant 0 : i32
    return %c0_i32, %c0_i32_0 : i32, i32
  }
  func.func @transform_14(%arg0: i32) -> (i32, i32) {
    %c0_i32 = arith.constant 0 : i32
    %c0_i32_0 = arith.constant 0 : i32
    %c0_i32_1 = arith.constant 0 : i32
    return %c0_i32, %c0_i32_0 : i32, i32
  }
}

</mosaic_0001>

<llo_original>
// kernel: decoder_forward.1
$region0: #{decoder_forward.1}
  #allocation0 [shape = 'u32[]', space=smem, size = 0x4, offset = 0x4, fixed_abs, tag = 'smem constant byte address 0x4 - core index']
  #allocation1 [shape = 'u32[144,128]{1,0:T(1,128)}', space=vmem, size = 0x12000, scoped, tag = 'internal scratch']
  #allocation2 [shape = 'f32[12,32]{1,0:T(8,128)}', space=vmem, size = 0x2000, scoped, tag = 'scratch operand']
  #allocation3 [shape = 'f32[32,32]{1,0:T(8,128)}', space=vmem, size = 0x4000, scoped, tag = 'scratch operand']
  #allocation4 [shape = 'f32[4,64]{1,0:T(4,128)}', space=vmem, size = 0x800, scoped, tag = 'scratch operand']
  %s0 = inlined_call_operand.vmem [shape: f32[4,2], index: 0, kind: input, shape index: {}]
  %s1 = inlined_call_operand.vmem [shape: f32[4,8], index: 1, kind: input, shape index: {}]
  %s2 = inlined_call_operand.vmem [shape: f32[8,32], index: 2, kind: input, shape index: {}]
  %s3 = inlined_call_operand.vmem [shape: f32[12,12], index: 3, kind: input, shape index: {}]
  %s4 = inlined_call_operand.vmem [shape: f32[32,32], index: 4, kind: input, shape index: {}]
  %s5 = inlined_call_operand.vmem [shape: f32[2,8], index: 5, kind: input, shape index: {}]
  %s6 = inlined_call_operand.vmem [shape: f32[1,8], index: 6, kind: input, shape index: {}]
  %s7 = inlined_call_operand.vmem [shape: f32[8,32], index: 7, kind: input, shape index: {}]
  %s8 = inlined_call_operand.vmem [shape: f32[8,32], index: 8, kind: input, shape index: {}]
  %s9 = inlined_call_operand.vmem [shape: f32[1,32], index: 9, kind: input, shape index: {}]
  %s10 = inlined_call_operand.vmem [shape: f32[2,32,32], index: 10, kind: input, shape index: {}]
  %s11 = inlined_call_operand.vmem [shape: f32[64,20], index: 11, kind: input, shape index: {}]
  %s12 = inlined_call_operand.vmem [shape: f32[1,20], index: 12, kind: input, shape index: {}]
  %s13 = inlined_call_operand.vmem [shape: f32[12,32], index: 13, kind: output, shape index: {0}]
  %s14 = inlined_call_operand.vmem [shape: f32[4,20], index: 14, kind: output, shape index: {1}]
  %15 = xla_tuple %s13, %s14
  %s16 = sld [smem:[#allocation0]]
  $region70: #{decoder_forward.1} parent=0
    _
  %s18 = ssub.s32 1, %s16
  %s19 = scalar_select 0, %s18, %s16
  // Predicated region
  $region2: #{decoder_forward.1} parent=0 // pred_check
    _
  $region3: #{decoder_forward.1} parent=0 // pred_check_branch
    %21 = sbr.rel (0) target = $region5
  $region4: #{decoder_forward.1} parent=0 // pred_region
    _
  $region5: #{decoder_forward.1} parent=0 // pred_fallthru
    _
  // Predicated region
  $region6: #{decoder_forward.1} parent=0 // pred_check
    _
  $region7: #{decoder_forward.1} parent=0 // pred_check_branch
    %23 = sbr.rel (0) target = $region9
  $region8: #{decoder_forward.1} parent=0 // pred_region
    _
  $region9: #{decoder_forward.1} parent=0 // pred_fallthru
    _
  // Predicated region
  $region10: #{decoder_forward.1} parent=0 // pred_check
    _
  $region11: #{decoder_forward.1} parent=0 // pred_check_branch
    %25 = sbr.rel (0) target = $region13
  $region12: #{decoder_forward.1} parent=0 // pred_region
    _
  $region13: #{decoder_forward.1} parent=0 // pred_fallthru
    _
  // Predicated region
  $region14: #{decoder_forward.1} parent=0 // pred_check
    _
  $region15: #{decoder_forward.1} parent=0 // pred_check_branch
    %27 = sbr.rel (0) target = $region17
  $region16: #{decoder_forward.1} parent=0 // pred_region
    _
  $region17: #{decoder_forward.1} parent=0 // pred_fallthru
    _
  // Predicated region
  $region18: #{decoder_forward.1} parent=0 // pred_check
    _
  $region19: #{decoder_forward.1} parent=0 // pred_check_branch
    %29 = sbr.rel (0) target = $region21
  $region20: #{decoder_forward.1} parent=0 // pred_region
    _
  $region21: #{decoder_forward.1} parent=0 // pred_fallthru
    _
  // Predicated region
  $region22: #{decoder_forward.1} parent=0 // pred_check
    _
  $region23: #{decoder_forward.1} parent=0 // pred_check_branch
    %31 = sbr.rel (0) target = $region25
  $region24: #{decoder_forward.1} parent=0 // pred_region
    _
  $region25: #{decoder_forward.1} parent=0 // pred_fallthru
    _
  // Predicated region
  $region26: #{decoder_forward.1} parent=0 // pred_check
    _
  $region27: #{decoder_forward.1} parent=0 // pred_check_branch
    %33 = sbr.rel (0) target = $region29
  $region28: #{decoder_forward.1} parent=0 // pred_region
    _
  $region29: #{decoder_forward.1} parent=0 // pred_fallthru
    _
  // Predicated region
  $region30: #{decoder_forward.1} parent=0 // pred_check
    _
  $region31: #{decoder_forward.1} parent=0 // pred_check_branch
    %35 = sbr.rel (0) target = $region33
  $region32: #{decoder_forward.1} parent=0 // pred_region
    _
  $region33: #{decoder_forward.1} parent=0 // pred_fallthru
    _
  // Predicated region
  $region34: #{decoder_forward.1} parent=0 // pred_check
    _
  $region35: #{decoder_forward.1} parent=0 // pred_check_branch
    %37 = sbr.rel (0) target = $region37
  $region36: #{decoder_forward.1} parent=0 // pred_region
    _
  $region37: #{decoder_forward.1} parent=0 // pred_fallthru
    _
  // Predicated region
  $region38: #{decoder_forward.1} parent=0 // pred_check
    _
  $region39: #{decoder_forward.1} parent=0 // pred_check_branch
    %39 = sbr.rel (0) target = $region41
  $region40: #{decoder_forward.1} parent=0 // pred_region
    _
  $region41: #{decoder_forward.1} parent=0 // pred_fallthru
    _
  // Predicated region
  $region42: #{decoder_forward.1} parent=0 // pred_check
    _
  $region43: #{decoder_forward.1} parent=0 // pred_check_branch
    %41 = sbr.rel (0) target = $region45
  $region44: #{decoder_forward.1} parent=0 // pred_region
    _
  $region45: #{decoder_forward.1} parent=0 // pred_fallthru
    _
  // Predicated region
  $region46: #{decoder_forward.1} parent=0 // pred_check
    _
  $region47: #{decoder_forward.1} parent=0 // pred_check_branch
    %43 = sbr.rel (0) target = $region49
  $region48: #{decoder_forward.1} parent=0 // pred_region
    _
  $region49: #{decoder_forward.1} parent=0 // pred_fallthru
    _
  // Predicated region
  $region50: #{decoder_forward.1} parent=0 // pred_check
    _
  $region51: #{decoder_forward.1} parent=0 // pred_check_branch
    %45 = sbr.rel (0) target = $region53
  $region52: #{decoder_forward.1} parent=0 // pred_region
    _
  $region53: #{decoder_forward.1} parent=0 // pred_fallthru
    _
  %v46 = vld [vmem:[%s10] sm:$0xff]
  %v47 = vld [vmem:[%s10 + $0x8] sm:$0xff]
  %v48 = vld [vmem:[%s10 + $0x10] sm:$0xff]
  %v49 = vld [vmem:[%s10 + $0x18] sm:$0xff]
  %v50 = vld [vmem:[%s10 + $0x20] sm:$0xff]
  %v51 = vld [vmem:[%s10 + $0x28] sm:$0xff]
  %v52 = vld [vmem:[%s10 + $0x30] sm:$0xff]
  %v53 = vld [vmem:[%s10 + $0x38] sm:$0xff]
  %v54 = vld [vmem:[%s0] sm:$0xf]
  %v55 = vld [vmem:[%s1] sm:$0xf]
  %v56 = vld [vmem:[%s5] sm:$0x3]
  %v57 = vld [vmem:[%s6] sm:$0x1]
  %v58 = vld [vmem:[%s7] sm:$0xff]
  %v59 = vld [vmem:[%s8] sm:$0xff]
  %v60 = vld [vmem:[%s9] sm:$0x1]
  %62 = vset.pattern.permute.xlu0 0
  %63 = vperm.xlu0 %62, %v54
  %v64 = vpop.permute.xlu0 %63
  %v66 = vlaneseq
  %v67 = vshrl.u32 %v66, 7
  %v68 = vsub.s32 0, %v67
  %v69 = vrot.slane %v56, %v68
  %v70 = vmul.f32 %v64, %v69
  %71 = vset.pattern.permute.xlu0 1
  %72 = vperm.xlu0 %71, %v54
  %v73 = vpop.permute.xlu0 %72
  %v75 = vlaneseq
  %v76 = vshrl.u32 %v75, 7
  %v77 = vsub.s32 1, %v76
  %v78 = vrot.slane %v56, %v77
  %v79 = vmul.f32 %v73, %v78
  %v80 = vadd.f32 %v70, %v79
  %v82 = vlaneseq
  %v83 = vshrl.u32 %v82, 7
  %v84 = vsub.s32 0, %v83
  %v85 = vrot.slane %v57, %v84
  %v87 = vadd.f32 %v80, %v85
  %v88 = vmax.f32 %v87, 0.0
  %vm89 = vcmask 64512
  %v91 = vsel %vm89, %v55, 0
  %93 = vmatprep.subr.mxu0 0.0
  %94 = vmatpush1.msra.mxu0 %v59
  %95 = vmatprep.subr.mxu0 0.0
  %96 = vmatpush1.msra.mxu0 0.0
  %97 = vmatprep.subr.mxu0 0.0
  %98 = vmatpush1.msra.mxu0 0.0
  %99 = vmatprep.subr.mxu0 0.0
  %100 = vmatpush1.msra.mxu0 0.0
  %101 = vmatprep.subr.mxu0 0.0
  %102 = vmatpush1.msra.mxu0 0.0
  %103 = vmatprep.subr.mxu0 0.0
  %104 = vmatpush1.msra.mxu0 0.0
  %105 = vmatprep.subr.mxu0 0.0
  %106 = vmatpush1.msra.mxu0 0.0
  %107 = vmatprep.subr.mxu0 0.0
  %108 = vmatpush1.msra.mxu0 0.0
  %109 = vmatprep.subr.mxu0 0.0
  %110 = vmatpush1.msra.mxu0 0.0
  %111 = vmatprep.subr.mxu0 0.0
  %112 = vmatpush1.msra.mxu0 0.0
  %113 = vmatprep.subr.mxu0 0.0
  %114 = vmatpush1.msra.mxu0 0.0
  %115 = vmatprep.subr.mxu0 0.0
  %116 = vmatpush1.msra.mxu0 0.0
  %117 = vmatprep.subr.mxu0 0.0
  %118 = vmatpush1.msra.mxu0 0.0
  %119 = vmatprep.subr.mxu0 0.0
  %120 = vmatpush1.msra.mxu0 0.0
  %121 = vmatprep.subr.mxu0 0.0
  %122 = vmatpush1.msra.mxu0 0.0
  %123 = vmatprep.subr.mxu0 0.0
  %124 = vmatpush1.msra.mxu0 0.0
  %125 = vmatprep.subr.mxu0 0.0
  %126 = vmatpush1.msra.mxu0 0.0
  %127 = vmatprep.subr.mxu0 0.0
  %128 = vmatpush1.msra.mxu0 0.0
  %129 = vmatprep.subr.mxu0 0.0
  %130 = vmatpush1.msra.mxu0 0.0
  %131 = vmatprep.subr.mxu0 0.0
  %132 = vmatpush1.msra.mxu0 0.0
  %133 = vmatprep.subr.mxu0 0.0
  %134 = vmatpush1.msra.mxu0 0.0
  %135 = vmatprep.subr.mxu0 0.0
  %136 = vmatpush1.msra.mxu0 0.0
  %137 = vmatprep.subr.mxu0 0.0
  %138 = vmatpush1.msra.mxu0 0.0
  %139 = vmatprep.subr.mxu0 0.0
  %140 = vmatpush1.msra.mxu0 0.0
  %141 = vmatprep.subr.mxu0 0.0
  %142 = vmatpush1.msra.mxu0 0.0
  %143 = vmatprep.subr.mxu0 0.0
  %144 = vmatpush1.msra.mxu0 0.0
  %145 = vmatprep.subr.mxu0 0.0
  %146 = vmatpush1.msra.mxu0 0.0
  %147 = vmatprep.subr.mxu0 0.0
  %148 = vmatpush1.msra.mxu0 0.0
  %149 = vmatprep.subr.mxu0 0.0
  %150 = vmatpush1.msra.mxu0 0.0
  %151 = vmatprep.subr.mxu0 0.0
  %152 = vmatpush1.msra.mxu0 0.0
  %153 = vmatprep.subr.mxu0 0.0
  %154 = vmatpush1.msra.mxu0 0.0
  %155 = vmatprep.subr.mxu0 0.0
  %156 = vmatpush1.msra.mxu0 0.0
  %157 = vmatprep.mubr.f32.mxu0 0.0
  %158 = vmatmul.mubr.f32.gmra.mrb[0].mxu0 %v91
  %v159 = vpop.f32.mrb[0].mxu0
  %v160 = vadd.f32 0.0, %v159
  %v161 = vpop.f32.mrb[0].mxu0
  %162 = vdwg.mxu0
  %v164 = vsel %vm89, %v88, 0
  %166 = vmatprep.subr.mxu0 0.0
  %167 = vmatpush1.msra.mxu0 %v58
  %168 = vmatprep.subr.mxu0 0.0
  %169 = vmatpush1.msra.mxu0 0.0
  %170 = vmatprep.subr.mxu0 0.0
  %171 = vmatpush1.msra.mxu0 0.0
  %172 = vmatprep.subr.mxu0 0.0
  %173 = vmatpush1.msra.mxu0 0.0
  %174 = vmatprep.subr.mxu0 0.0
  %175 = vmatpush1.msra.mxu0 0.0
  %176 = vmatprep.subr.mxu0 0.0
  %177 = vmatpush1.msra.mxu0 0.0
  %178 = vmatprep.subr.mxu0 0.0
  %179 = vmatpush1.msra.mxu0 0.0
  %180 = vmatprep.subr.mxu0 0.0
  %181 = vmatpush1.msra.mxu0 0.0
  %182 = vmatprep.subr.mxu0 0.0
  %183 = vmatpush1.msra.mxu0 0.0
  %184 = vmatprep.subr.mxu0 0.0
  %185 = vmatpush1.msra.mxu0 0.0
  %186 = vmatprep.subr.mxu0 0.0
  %187 = vmatpush1.msra.mxu0 0.0
  %188 = vmatprep.subr.mxu0 0.0
  %189 = vmatpush1.msra.mxu0 0.0
  %190 = vmatprep.subr.mxu0 0.0
  %191 = vmatpush1.msra.mxu0 0.0
  %192 = vmatprep.subr.mxu0 0.0
  %193 = vmatpush1.msra.mxu0 0.0
  %194 = vmatprep.subr.mxu0 0.0
  %195 = vmatpush1.msra.mxu0 0.0
  %196 = vmatprep.subr.mxu0 0.0
  %197 = vmatpush1.msra.mxu0 0.0
  %198 = vmatprep.subr.mxu0 0.0
  %199 = vmatpush1.msra.mxu0 0.0
  %200 = vmatprep.subr.mxu0 0.0
  %201 = vmatpush1.msra.mxu0 0.0
  %202 = vmatprep.subr.mxu0 0.0
  %203 = vmatpush1.msra.mxu0 0.0
  %204 = vmatprep.subr.mxu0 0.0
  %205 = vmatpush1.msra.mxu0 0.0
  %206 = vmatprep.subr.mxu0 0.0
  %207 = vmatpush1.msra.mxu0 0.0
  %208 = vmatprep.subr.mxu0 0.0
  %209 = vmatpush1.msra.mxu0 0.0
  %210 = vmatprep.subr.mxu0 0.0
  %211 = vmatpush1.msra.mxu0 0.0
  %212 = vmatprep.subr.mxu0 0.0
  %213 = vmatpush1.msra.mxu0 0.0
  %214 = vmatprep.subr.mxu0 0.0
  %215 = vmatpush1.msra.mxu0 0.0
  %216 = vmatprep.subr.mxu0 0.0
  %217 = vmatpush1.msra.mxu0 0.0
  %218 = vmatprep.subr.mxu0 0.0
  %219 = vmatpush1.msra.mxu0 0.0
  %220 = vmatprep.subr.mxu0 0.0
  %221 = vmatpush1.msra.mxu0 0.0
  %222 = vmatprep.subr.mxu0 0.0
  %223 = vmatpush1.msra.mxu0 0.0
  %224 = vmatprep.subr.mxu0 0.0
  %225 = vmatpush1.msra.mxu0 0.0
  %226 = vmatprep.subr.mxu0 0.0
  %227 = vmatpush1.msra.mxu0 0.0
  %228 = vmatprep.subr.mxu0 0.0
  %229 = vmatpush1.msra.mxu0 0.0
  %230 = vmatprep.mubr.f32.mxu0 0.0
  %231 = vmatmul.mubr.f32.gmra.mrb[0].mxu0 %v164
  %v232 = vpop.f32.mrb[0].mxu0
  %v233 = vadd.f32 %v160, %v232
  %v234 = vpop.f32.mrb[0].mxu0
  %235 = vdwg.mxu0
  %v237 = vlaneseq
  %v238 = vshrl.u32 %v237, 7
  %v239 = vsub.s32 0, %v238
  %v240 = vrot.slane %v60, %v239
  %v242 = vadd.f32 %v233, %v240
  %v243 = vld [vmem:[%s2] sm:$0xf]
  %vm244 = vcmask 257024
  %245 = vst.msk [vmem:[#allocation2] sm:$0xf] %vm244, %v243
  %vm246 = vcmask 254976
  %247 = vst.msk [vmem:[#allocation2 + $0x4] sm:$0x3] %vm246, %v242
  %v248 = vld [vmem:[%s2 + $0x4] sm:$0xf]
  %249 = vst.msk [vmem:[#allocation2 + $0x6] sm:$0xf] %vm244, %v248
  %vm250 = vcmask 257026
  %251 = vst.msk [vmem:[#allocation2 + $0x8] sm:$0xc] %vm250, %v242
  %v252 = vld [vmem:[%s3] sm:$0xff]
  %v253 = vld [vmem:[%s3 + $0x8] sm:$0xf]
  %v254 = vlaneseq
  %v255 = vshrl.u32 %v254, 7
  %v256 = vadd.s32 %v255, 8
  %v257 = vlaneseq
  %v258 = vand.u32 %v257, 127
  %vm259 = vcmp.eq.s32.totalorder %v255, %v258
  %vm260 = vcmp.eq.s32.totalorder %v256, %v258
  %v261 = vsel %vm259, 1, 0
  %v262 = vsel %vm260, 1, 0
  %v263 = vcvt.s32.f32 %v261
  %v264 = vcvt.s32.f32 %v262
  %v265 = vadd.f32 %v252, %v263
  %v266 = vadd.f32 %v253, %v264
  %vm267 = vcmask 97280
  %v268 = vsel %vm267, %v265, 0.0
  %269 = vadd.xlane.f32.xlu0 %v268
  %v270 = vpop.xlane.xlu0 %269
  %vm271 = vcmask 93184
  %v272 = vsel %vm271, %v266, 0.0
  %273 = vadd.xlane.f32.xlu0 %v272
  %v274 = vpop.xlane.xlu0 %273
  %vm275 = vcmp.gt.f32.partialorder %v270, 0.0
  %vm276 = vcmp.gt.f32.partialorder %v274, 0.0
  %v277 = vrsqrt.pop %v270
  %v278 = vrsqrt.pop %v274
  %v279 = vsel %vm275, %v277, 0.0
  %v280 = vsel %vm276, %v278, 0.0
  %v281 = vmul.f32 %v279, %v263
  %v282 = vmul.f32 %v280, %v264
  %v283 = vsel %vm267, %v281, 0.0
  %v284 = vsel %vm271, %v282, 0.0
  %v285 = vadd.f32 %v283, %v284
  %v286 = vrot.slane %v285, 4
  %v287 = vadd.f32 %v285, %v286
  %v288 = vrot.slane %v287, 2
  %v289 = vadd.f32 %v287, %v288
  %v290 = vrot.slane %v289, 1
  %v291 = vadd.f32 %v289, %v290
  %v292 = vmul.f32 %v265, %v279
  %v293 = vmul.f32 %v266, %v280
  %v294 = vmul.f32 %v292, %v291
  %v295 = vmul.f32 %v293, %v291
  %v296 = vld [vmem:[#allocation2] sm:$0xff]
  %v297 = vld [vmem:[#allocation2 + $0x8] sm:$0xf]
  %vm298 = vcmask 261120
  %v300 = vsel %vm298, %v296, 0
  %v303 = vsel %vm298, %v297, 0
  %305 = vmatprep.subr.mxu0 0.0
  %306 = vmatpush1.msra.mxu0 %v46
  %307 = vmatprep.subr.mxu0 0.0
  %308 = vmatpush1.msra.mxu0 %v47
  %309 = vmatprep.subr.mxu0 0.0
  %310 = vmatpush1.msra.mxu0 %v48
  %311 = vmatprep.subr.mxu0 0.0
  %312 = vmatpush1.msra.mxu0 %v49
  %313 = vmatprep.subr.mxu0 0.0
  %314 = vmatpush1.msra.mxu0 0.0
  %315 = vmatprep.subr.mxu0 0.0
  %316 = vmatpush1.msra.mxu0 0.0
  %317 = vmatprep.subr.mxu0 0.0
  %318 = vmatpush1.msra.mxu0 0.0
  %319 = vmatprep.subr.mxu0 0.0
  %320 = vmatpush1.msra.mxu0 0.0
  %321 = vmatprep.subr.mxu0 0.0
  %322 = vmatpush1.msra.mxu0 0.0
  %323 = vmatprep.subr.mxu0 0.0
  %324 = vmatpush1.msra.mxu0 0.0
  %325 = vmatprep.subr.mxu0 0.0
  %326 = vmatpush1.msra.mxu0 0.0
  %327 = vmatprep.subr.mxu0 0.0
  %328 = vmatpush1.msra.mxu0 0.0
  %329 = vmatprep.subr.mxu0 0.0
  %330 = vmatpush1.msra.mxu0 0.0
  %331 = vmatprep.subr.mxu0 0.0
  %332 = vmatpush1.msra.mxu0 0.0
  %333 = vmatprep.subr.mxu0 0.0
  %334 = vmatpush1.msra.mxu0 0.0
  %335 = vmatprep.subr.mxu0 0.0
  %336 = vmatpush1.msra.mxu0 0.0
  %337 = vmatprep.subr.mxu0 0.0
  %338 = vmatpush1.msra.mxu0 0.0
  %339 = vmatprep.subr.mxu0 0.0
  %340 = vmatpush1.msra.mxu0 0.0
  %341 = vmatprep.subr.mxu0 0.0
  %342 = vmatpush1.msra.mxu0 0.0
  %343 = vmatprep.subr.mxu0 0.0
  %344 = vmatpush1.msra.mxu0 0.0
  %345 = vmatprep.subr.mxu0 0.0
  %346 = vmatpush1.msra.mxu0 0.0
  %347 = vmatprep.subr.mxu0 0.0
  %348 = vmatpush1.msra.mxu0 0.0
  %349 = vmatprep.subr.mxu0 0.0
  %350 = vmatpush1.msra.mxu0 0.0
  %351 = vmatprep.subr.mxu0 0.0
  %352 = vmatpush1.msra.mxu0 0.0
  %353 = vmatprep.subr.mxu0 0.0
  %354 = vmatpush1.msra.mxu0 0.0
  %355 = vmatprep.subr.mxu0 0.0
  %356 = vmatpush1.msra.mxu0 0.0
  %357 = vmatprep.subr.mxu0 0.0
  %358 = vmatpush1.msra.mxu0 0.0
  %359 = vmatprep.subr.mxu0 0.0
  %360 = vmatpush1.msra.mxu0 0.0
  %361 = vmatprep.subr.mxu0 0.0
  %362 = vmatpush1.msra.mxu0 0.0
  %363 = vmatprep.subr.mxu0 0.0
  %364 = vmatpush1.msra.mxu0 0.0
  %365 = vmatprep.subr.mxu0 0.0
  %366 = vmatpush1.msra.mxu0 0.0
  %367 = vmatprep.subr.mxu0 0.0
  %368 = vmatpush1.msra.mxu0 0.0
  %369 = vmatprep.mubr.f32.mxu0 0.0
  %370 = vmatmul.mubr.f32.gmra.mrb[0].mxu0 %v300
  %v371 = vpop.f32.mrb[0].mxu0
  %v372 = vadd.f32 0.0, %v371
  %v373 = vpop.f32.mrb[0].mxu0
  %374 = vmatprep.mubr.f32.mxu0 0.0
  %375 = vmatmul.mubr.f32.gmra.mrb[0].mxu0 %v303
  %v376 = vpop.f32.mrb[0].mxu0
  %v377 = vadd.f32 0.0, %v376
  %v378 = vpop.f32.mrb[0].mxu0
  %379 = vdwg.mxu0
  %v381 = vsel %vm267, %v294, 0
  %v384 = vsel %vm267, %v295, 0
  %vm386 = vcmask 1043456
  %v388 = vsel %vm386, %v377, 0
  %390 = vmatprep.subr.mxu0 0.0
  %391 = vmatpush1.msra.mxu0 %v372
  %392 = vmatprep.subr.mxu0 0.0
  %393 = vmatpush1.msra.mxu0 %v388
  %394 = vmatprep.subr.mxu0 0.0
  %395 = vmatpush1.msra.mxu0 0.0
  %396 = vmatprep.subr.mxu0 0.0
  %397 = vmatpush1.msra.mxu0 0.0
  %398 = vmatprep.subr.mxu0 0.0
  %399 = vmatpush1.msra.mxu0 0.0
  %400 = vmatprep.subr.mxu0 0.0
  %401 = vmatpush1.msra.mxu0 0.0
  %402 = vmatprep.subr.mxu0 0.0
  %403 = vmatpush1.msra.mxu0 0.0
  %404 = vmatprep.subr.mxu0 0.0
  %405 = vmatpush1.msra.mxu0 0.0
  %406 = vmatprep.subr.mxu0 0.0
  %407 = vmatpush1.msra.mxu0 0.0
  %408 = vmatprep.subr.mxu0 0.0
  %409 = vmatpush1.msra.mxu0 0.0
  %410 = vmatprep.subr.mxu0 0.0
  %411 = vmatpush1.msra.mxu0 0.0
  %412 = vmatprep.subr.mxu0 0.0
  %413 = vmatpush1.msra.mxu0 0.0
  %414 = vmatprep.subr.mxu0 0.0
  %415 = vmatpush1.msra.mxu0 0.0
  %416 = vmatprep.subr.mxu0 0.0
  %417 = vmatpush1.msra.mxu0 0.0
  %418 = vmatprep.subr.mxu0 0.0
  %419 = vmatpush1.msra.mxu0 0.0
  %420 = vmatprep.subr.mxu0 0.0
  %421 = vmatpush1.msra.mxu0 0.0
  %422 = vmatprep.subr.mxu0 0.0
  %423 = vmatpush1.msra.mxu0 0.0
  %424 = vmatprep.subr.mxu0 0.0
  %425 = vmatpush1.msra.mxu0 0.0
  %426 = vmatprep.subr.mxu0 0.0
  %427 = vmatpush1.msra.mxu0 0.0
  %428 = vmatprep.subr.mxu0 0.0
  %429 = vmatpush1.msra.mxu0 0.0
  %430 = vmatprep.subr.mxu0 0.0
  %431 = vmatpush1.msra.mxu0 0.0
  %432 = vmatprep.subr.mxu0 0.0
  %433 = vmatpush1.msra.mxu0 0.0
  %434 = vmatprep.subr.mxu0 0.0
  %435 = vmatpush1.msra.mxu0 0.0
  %436 = vmatprep.subr.mxu0 0.0
  %437 = vmatpush1.msra.mxu0 0.0
  %438 = vmatprep.subr.mxu0 0.0
  %439 = vmatpush1.msra.mxu0 0.0
  %440 = vmatprep.subr.mxu0 0.0
  %441 = vmatpush1.msra.mxu0 0.0
  %442 = vmatprep.subr.mxu0 0.0
  %443 = vmatpush1.msra.mxu0 0.0
  %444 = vmatprep.subr.mxu0 0.0
  %445 = vmatpush1.msra.mxu0 0.0
  %446 = vmatprep.subr.mxu0 0.0
  %447 = vmatpush1.msra.mxu0 0.0
  %448 = vmatprep.subr.mxu0 0.0
  %449 = vmatpush1.msra.mxu0 0.0
  %450 = vmatprep.subr.mxu0 0.0
  %451 = vmatpush1.msra.mxu0 0.0
  %452 = vmatprep.subr.mxu0 0.0
  %453 = vmatpush1.msra.mxu0 0.0
  %454 = vmatprep.mubr.f32.mxu0 0.0
  %455 = vmatmul.mubr.f32.gmra.mrb[0].mxu0 %v381
  %v456 = vpop.f32.mrb[0].mxu0
  %v457 = vadd.f32 0.0, %v456
  %v458 = vpop.f32.mrb[0].mxu0
  %459 = vmatprep.mubr.f32.mxu0 0.0
  %460 = vmatmul.mubr.f32.gmra.mrb[0].mxu0 %v384
  %v461 = vpop.f32.mrb[0].mxu0
  %v462 = vadd.f32 0.0, %v461
  %v463 = vpop.f32.mrb[0].mxu0
  %464 = vdwg.mxu0
  %v465 = vmax.f32 %v457, 0.0
  %v466 = vmax.f32 %v462, 0.0
  %v468 = vsel %vm298, %v465, 0
  %v471 = vsel %vm298, %v466, 0
  %473 = vmatprep.subr.mxu0 0.0
  %474 = vmatpush1.msra.mxu0 %v50
  %475 = vmatprep.subr.mxu0 0.0
  %476 = vmatpush1.msra.mxu0 %v51
  %477 = vmatprep.subr.mxu0 0.0
  %478 = vmatpush1.msra.mxu0 %v52
  %479 = vmatprep.subr.mxu0 0.0
  %480 = vmatpush1.msra.mxu0 %v53
  %481 = vmatprep.subr.mxu0 0.0
  %482 = vmatpush1.msra.mxu0 0.0
  %483 = vmatprep.subr.mxu0 0.0
  %484 = vmatpush1.msra.mxu0 0.0
  %485 = vmatprep.subr.mxu0 0.0
  %486 = vmatpush1.msra.mxu0 0.0
  %487 = vmatprep.subr.mxu0 0.0
  %488 = vmatpush1.msra.mxu0 0.0
  %489 = vmatprep.subr.mxu0 0.0
  %490 = vmatpush1.msra.mxu0 0.0
  %491 = vmatprep.subr.mxu0 0.0
  %492 = vmatpush1.msra.mxu0 0.0
  %493 = vmatprep.subr.mxu0 0.0
  %494 = vmatpush1.msra.mxu0 0.0
  %495 = vmatprep.subr.mxu0 0.0
  %496 = vmatpush1.msra.mxu0 0.0
  %497 = vmatprep.subr.mxu0 0.0
  %498 = vmatpush1.msra.mxu0 0.0
  %499 = vmatprep.subr.mxu0 0.0
  %500 = vmatpush1.msra.mxu0 0.0
  %501 = vmatprep.subr.mxu0 0.0
  %502 = vmatpush1.msra.mxu0 0.0
  %503 = vmatprep.subr.mxu0 0.0
  %504 = vmatpush1.msra.mxu0 0.0
  %505 = vmatprep.subr.mxu0 0.0
  %506 = vmatpush1.msra.mxu0 0.0
  %507 = vmatprep.subr.mxu0 0.0
  %508 = vmatpush1.msra.mxu0 0.0
  %509 = vmatprep.subr.mxu0 0.0
  %510 = vmatpush1.msra.mxu0 0.0
  %511 = vmatprep.subr.mxu0 0.0
  %512 = vmatpush1.msra.mxu0 0.0
  %513 = vmatprep.subr.mxu0 0.0
  %514 = vmatpush1.msra.mxu0 0.0
  %515 = vmatprep.subr.mxu0 0.0
  %516 = vmatpush1.msra.mxu0 0.0
  %517 = vmatprep.subr.mxu0 0.0
  %518 = vmatpush1.msra.mxu0 0.0
  %519 = vmatprep.subr.mxu0 0.0
  %520 = vmatpush1.msra.mxu0 0.0
  %521 = vmatprep.subr.mxu0 0.0
  %522 = vmatpush1.msra.mxu0 0.0
  %523 = vmatprep.subr.mxu0 0.0
  %524 = vmatpush1.msra.mxu0 0.0
  %525 = vmatprep.subr.mxu0 0.0
  %526 = vmatpush1.msra.mxu0 0.0
  %527 = vmatprep.subr.mxu0 0.0
  %528 = vmatpush1.msra.mxu0 0.0
  %529 = vmatprep.subr.mxu0 0.0
  %530 = vmatpush1.msra.mxu0 0.0
  %531 = vmatprep.subr.mxu0 0.0
  %532 = vmatpush1.msra.mxu0 0.0
  %533 = vmatprep.subr.mxu0 0.0
  %534 = vmatpush1.msra.mxu0 0.0
  %535 = vmatprep.subr.mxu0 0.0
  %536 = vmatpush1.msra.mxu0 0.0
  %537 = vmatprep.mubr.f32.mxu0 0.0
  %538 = vmatmul.mubr.f32.gmra.mrb[0].mxu0 %v468
  %v539 = vpop.f32.mrb[0].mxu0
  %v540 = vadd.f32 0.0, %v539
  %v541 = vpop.f32.mrb[0].mxu0
  %542 = vmatprep.mubr.f32.mxu0 0.0
  %543 = vmatmul.mubr.f32.gmra.mrb[0].mxu0 %v471
  %v544 = vpop.f32.mrb[0].mxu0
  %v545 = vadd.f32 0.0, %v544
  %v546 = vpop.f32.mrb[0].mxu0
  %547 = vdwg.mxu0
  %v549 = vsel %vm386, %v545, 0
  %551 = vmatprep.subr.mxu0 0.0
  %552 = vmatpush1.msra.mxu0 %v540
  %553 = vmatprep.subr.mxu0 0.0
  %554 = vmatpush1.msra.mxu0 %v549
  %555 = vmatprep.subr.mxu0 0.0
  %556 = vmatpush1.msra.mxu0 0.0
  %557 = vmatprep.subr.mxu0 0.0
  %558 = vmatpush1.msra.mxu0 0.0
  %559 = vmatprep.subr.mxu0 0.0
  %560 = vmatpush1.msra.mxu0 0.0
  %561 = vmatprep.subr.mxu0 0.0
  %562 = vmatpush1.msra.mxu0 0.0
  %563 = vmatprep.subr.mxu0 0.0
  %564 = vmatpush1.msra.mxu0 0.0
  %565 = vmatprep.subr.mxu0 0.0
  %566 = vmatpush1.msra.mxu0 0.0
  %567 = vmatprep.subr.mxu0 0.0
  %568 = vmatpush1.msra.mxu0 0.0
  %569 = vmatprep.subr.mxu0 0.0
  %570 = vmatpush1.msra.mxu0 0.0
  %571 = vmatprep.subr.mxu0 0.0
  %572 = vmatpush1.msra.mxu0 0.0
  %573 = vmatprep.subr.mxu0 0.0
  %574 = vmatpush1.msra.mxu0 0.0
  %575 = vmatprep.subr.mxu0 0.0
  %576 = vmatpush1.msra.mxu0 0.0
  %577 = vmatprep.subr.mxu0 0.0
  %578 = vmatpush1.msra.mxu0 0.0
  %579 = vmatprep.subr.mxu0 0.0
  %580 = vmatpush1.msra.mxu0 0.0
  %581 = vmatprep.subr.mxu0 0.0
  %582 = vmatpush1.msra.mxu0 0.0
  %583 = vmatprep.subr.mxu0 0.0
  %584 = vmatpush1.msra.mxu0 0.0
  %585 = vmatprep.subr.mxu0 0.0
  %586 = vmatpush1.msra.mxu0 0.0
  %587 = vmatprep.subr.mxu0 0.0
  %588 = vmatpush1.msra.mxu0 0.0
  %589 = vmatprep.subr.mxu0 0.0
  %590 = vmatpush1.msra.mxu0 0.0
  %591 = vmatprep.subr.mxu0 0.0
  %592 = vmatpush1.msra.mxu0 0.0
  %593 = vmatprep.subr.mxu0 0.0
  %594 = vmatpush1.msra.mxu0 0.0
  %595 = vmatprep.subr.mxu0 0.0
  %596 = vmatpush1.msra.mxu0 0.0
  %597 = vmatprep.subr.mxu0 0.0
  %598 = vmatpush1.msra.mxu0 0.0
  %599 = vmatprep.subr.mxu0 0.0
  %600 = vmatpush1.msra.mxu0 0.0
  %601 = vmatprep.subr.mxu0 0.0
  %602 = vmatpush1.msra.mxu0 0.0
  %603 = vmatprep.subr.mxu0 0.0
  %604 = vmatpush1.msra.mxu0 0.0
  %605 = vmatprep.subr.mxu0 0.0
  %606 = vmatpush1.msra.mxu0 0.0
  %607 = vmatprep.subr.mxu0 0.0
  %608 = vmatpush1.msra.mxu0 0.0
  %609 = vmatprep.subr.mxu0 0.0
  %610 = vmatpush1.msra.mxu0 0.0
  %611 = vmatprep.subr.mxu0 0.0
  %612 = vmatpush1.msra.mxu0 0.0
  %613 = vmatprep.subr.mxu0 0.0
  %614 = vmatpush1.msra.mxu0 0.0
  %615 = vmatprep.mubr.f32.mxu0 0.0
  %616 = vmatmul.mubr.f32.gmra.mrb[0].mxu0 %v381
  %v617 = vpop.f32.mrb[0].mxu0
  %v618 = vadd.f32 0.0, %v617
  %v619 = vpop.f32.mrb[0].mxu0
  %620 = vmatprep.mubr.f32.mxu0 0.0
  %621 = vmatmul.mubr.f32.gmra.mrb[0].mxu0 %v384
  %v622 = vpop.f32.mrb[0].mxu0
  %v623 = vadd.f32 0.0, %v622
  %v624 = vpop.f32.mrb[0].mxu0
  %625 = vdwg.mxu0
  %v626 = vsub.f32 0.0, %v618
  %v627 = vsub.f32 0.0, %v623
  %v628 = vmul.f32 %v626, 1.442695
  %v629 = vpow.pop %v628
  %v630 = vmul.f32 %v627, 1.442695
  %v631 = vpow.pop %v630
  %v632 = vadd.f32 %v629, 1.0
  %v633 = vadd.f32 %v631, 1.0
  %v634 = vrcp.pop %v632
  %v635 = vrcp.pop %v633
  %v636 = vld [vmem:[%s2] sm:$0x3]
  %637 = vst.msk [vmem:[%s13] sm:$0x3] %vm246, %v636
  %vm638 = vcmask 259074
  %639 = vst.msk [vmem:[%s13] sm:$0x3c] %vm638, %v634
  %640 = vst.msk [vmem:[#allocation3] sm:$0x3] %vm246, %v636
  %641 = vst.msk [vmem:[#allocation3] sm:$0x3c] %vm638, %v634
  %642 = vst.msk [vmem:[#allocation3 + $0x6] sm:$0x3] %vm246, %v242
  %643 = vst.msk [vmem:[#allocation3 + $0x10] sm:$0x3] %vm246, %v636
  %644 = vst.msk [vmem:[#allocation3 + $0x10] sm:$0x3c] %vm638, %v634
  %645 = vst.msk [vmem:[#allocation3 + $0x16] sm:$0x3] %vm246, %v242
  %v646 = vld [vmem:[%s2 + $0x4] sm:$0x3]
  %647 = vst.msk [vmem:[%s13 + $0x6] sm:$0x3] %vm246, %v646
  %648 = vst.msk [vmem:[%s13 + $0x8] sm:$0xf] %vm244, %v635
  %649 = vst.msk [vmem:[#allocation3 + $0x8] sm:$0x3] %vm246, %v646
  %650 = vst.msk [vmem:[#allocation3 + $0xa] sm:$0xf] %vm244, %v635
  %651 = vst.msk [vmem:[#allocation3 + $0xc] sm:$0xc] %vm250, %v242
  %652 = vst.msk [vmem:[#allocation3 + $0x18] sm:$0x3] %vm246, %v646
  %653 = vst.msk [vmem:[#allocation3 + $0x1a] sm:$0xf] %vm244, %v635
  %654 = vst.msk [vmem:[#allocation3 + $0x1c] sm:$0xc] %vm250, %v242
  %v655 = vld [vmem:[%s4] sm:$0xff]
  %v656 = vld [vmem:[%s4 + $0x8] sm:$0xff]
  %v657 = vld [vmem:[%s4 + $0x10] sm:$0xff]
  %v658 = vld [vmem:[%s4 + $0x18] sm:$0xff]
  %v659 = vadd.s32 %v255, 16
  %v660 = vadd.s32 %v255, 24
  %vm661 = vcmp.eq.s32.totalorder %v659, %v258
  %vm662 = vcmp.eq.s32.totalorder %v660, %v258
  %v663 = vsel %vm661, 1, 0
  %v664 = vsel %vm662, 1, 0
  %v665 = vcvt.s32.f32 %v663
  %v666 = vcvt.s32.f32 %v664
  %v667 = vadd.f32 %v655, %v263
  %v668 = vadd.f32 %v656, %v264
  %v669 = vadd.f32 %v657, %v665
  %v670 = vadd.f32 %v658, %v666
  %v671 = vsel %vm298, %v667, 0.0
  %672 = vadd.xlane.f32.xlu0 %v671
  %v673 = vpop.xlane.xlu0 %672
  %v674 = vsel %vm298, %v668, 0.0
  %675 = vadd.xlane.f32.xlu0 %v674
  %v676 = vpop.xlane.xlu0 %675
  %v677 = vsel %vm298, %v669, 0.0
  %678 = vadd.xlane.f32.xlu0 %v677
  %v679 = vpop.xlane.xlu0 %678
  %v680 = vsel %vm298, %v670, 0.0
  %681 = vadd.xlane.f32.xlu0 %v680
  %v682 = vpop.xlane.xlu0 %681
  %vm683 = vcmp.gt.f32.partialorder %v673, 0.0
  %vm684 = vcmp.gt.f32.partialorder %v676, 0.0
  %vm685 = vcmp.gt.f32.partialorder %v679, 0.0
  %vm686 = vcmp.gt.f32.partialorder %v682, 0.0
  %v687 = vrsqrt.pop %v673
  %v688 = vrsqrt.pop %v676
  %v689 = vrsqrt.pop %v679
  %v690 = vrsqrt.pop %v682
  %v691 = vsel %vm683, %v687, 0.0
  %v692 = vsel %vm684, %v688, 0.0
  %v693 = vsel %vm685, %v689, 0.0
  %v694 = vsel %vm686, %v690, 0.0
  %v695 = vmul.f32 %v691, %v263
  %v696 = vmul.f32 %v692, %v264
  %v697 = vmul.f32 %v693, %v665
  %v698 = vmul.f32 %v694, %v666
  %v699 = vsel %vm298, %v695, 0.0
  %v700 = vsel %vm298, %v696, 0.0
  %v701 = vadd.f32 %v699, %v700
  %v702 = vsel %vm298, %v697, 0.0
  %v703 = vadd.f32 %v701, %v702
  %v704 = vsel %vm298, %v698, 0.0
  %v705 = vadd.f32 %v703, %v704
  %v706 = vrot.slane %v705, 4
  %v707 = vadd.f32 %v705, %v706
  %v708 = vrot.slane %v707, 2
  %v709 = vadd.f32 %v707, %v708
  %v710 = vrot.slane %v709, 1
  %v711 = vadd.f32 %v709, %v710
  %v712 = vmul.f32 %v667, %v691
  %v713 = vmul.f32 %v668, %v692
  %v714 = vmul.f32 %v669, %v693
  %v715 = vmul.f32 %v670, %v694
  %v716 = vmul.f32 %v712, %v711
  %v717 = vmul.f32 %v713, %v711
  %v718 = vmul.f32 %v714, %v711
  %v719 = vmul.f32 %v715, %v711
  %v720 = vld [vmem:[#allocation3] sm:$0xff]
  %v721 = vld [vmem:[#allocation3 + $0x8] sm:$0xff]
  %v722 = vld [vmem:[#allocation3 + $0x10] sm:$0xff]
  %v723 = vld [vmem:[#allocation3 + $0x18] sm:$0xff]
  %v725 = vsel %vm298, %v720, 0
  %v728 = vsel %vm298, %v721, 0
  %v731 = vsel %vm298, %v722, 0
  %v734 = vsel %vm298, %v723, 0
  %736 = vmatprep.subr.mxu0 0.0
  %737 = vmatpush1.msra.mxu0 %v46
  %738 = vmatprep.subr.mxu0 0.0
  %739 = vmatpush1.msra.mxu0 %v47
  %740 = vmatprep.subr.mxu0 0.0
  %741 = vmatpush1.msra.mxu0 %v48
  %742 = vmatprep.subr.mxu0 0.0
  %743 = vmatpush1.msra.mxu0 %v49
  %744 = vmatprep.subr.mxu0 0.0
  %745 = vmatpush1.msra.mxu0 0.0
  %746 = vmatprep.subr.mxu0 0.0
  %747 = vmatpush1.msra.mxu0 0.0
  %748 = vmatprep.subr.mxu0 0.0
  %749 = vmatpush1.msra.mxu0 0.0
  %750 = vmatprep.subr.mxu0 0.0
  %751 = vmatpush1.msra.mxu0 0.0
  %752 = vmatprep.subr.mxu0 0.0
  %753 = vmatpush1.msra.mxu0 0.0
  %754 = vmatprep.subr.mxu0 0.0
  %755 = vmatpush1.msra.mxu0 0.0
  %756 = vmatprep.subr.mxu0 0.0
  %757 = vmatpush1.msra.mxu0 0.0
  %758 = vmatprep.subr.mxu0 0.0
  %759 = vmatpush1.msra.mxu0 0.0
  %760 = vmatprep.subr.mxu0 0.0
  %761 = vmatpush1.msra.mxu0 0.0
  %762 = vmatprep.subr.mxu0 0.0
  %763 = vmatpush1.msra.mxu0 0.0
  %764 = vmatprep.subr.mxu0 0.0
  %765 = vmatpush1.msra.mxu0 0.0
  %766 = vmatprep.subr.mxu0 0.0
  %767 = vmatpush1.msra.mxu0 0.0
  %768 = vmatprep.subr.mxu0 0.0
  %769 = vmatpush1.msra.mxu0 0.0
  %770 = vmatprep.subr.mxu0 0.0
  %771 = vmatpush1.msra.mxu0 0.0
  %772 = vmatprep.subr.mxu0 0.0
  %773 = vmatpush1.msra.mxu0 0.0
  %774 = vmatprep.subr.mxu0 0.0
  %775 = vmatpush1.msra.mxu0 0.0
  %776 = vmatprep.subr.mxu0 0.0
  %777 = vmatpush1.msra.mxu0 0.0
  %778 = vmatprep.subr.mxu0 0.0
  %779 = vmatpush1.msra.mxu0 0.0
  %780 = vmatprep.subr.mxu0 0.0
  %781 = vmatpush1.msra.mxu0 0.0
  %782 = vmatprep.subr.mxu0 0.0
  %783 = vmatpush1.msra.mxu0 0.0
  %784 = vmatprep.subr.mxu0 0.0
  %785 = vmatpush1.msra.mxu0 0.0
  %786 = vmatprep.subr.mxu0 0.0
  %787 = vmatpush1.msra.mxu0 0.0
  %788 = vmatprep.subr.mxu0 0.0
  %789 = vmatpush1.msra.mxu0 0.0
  %790 = vmatprep.subr.mxu0 0.0
  %791 = vmatpush1.msra.mxu0 0.0
  %792 = vmatprep.subr.mxu0 0.0
  %793 = vmatpush1.msra.mxu0 0.0
  %794 = vmatprep.subr.mxu0 0.0
  %795 = vmatpush1.msra.mxu0 0.0
  %796 = vmatprep.subr.mxu0 0.0
  %797 = vmatpush1.msra.mxu0 0.0
  %798 = vmatprep.subr.mxu0 0.0
  %799 = vmatpush1.msra.mxu0 0.0
  %800 = vmatprep.mubr.f32.mxu0 0.0
  %801 = vmatmul.mubr.f32.gmra.mrb[0].mxu0 %v725
  %v802 = vpop.f32.mrb[0].mxu0
  %v803 = vadd.f32 0.0, %v802
  %v804 = vpop.f32.mrb[0].mxu0
  %805 = vmatprep.mubr.f32.mxu0 0.0
  %806 = vmatmul.mubr.f32.gmra.mrb[0].mxu0 %v728
  %v807 = vpop.f32.mrb[0].mxu0
  %v808 = vadd.f32 0.0, %v807
  %v809 = vpop.f32.mrb[0].mxu0
  %810 = vmatprep.mubr.f32.mxu0 0.0
  %811 = vmatmul.mubr.f32.gmra.mrb[0].mxu0 %v731
  %v812 = vpop.f32.mrb[0].mxu0
  %v813 = vadd.f32 0.0, %v812
  %v814 = vpop.f32.mrb[0].mxu0
  %815 = vmatprep.mubr.f32.mxu0 0.0
  %816 = vmatmul.mubr.f32.gmra.mrb[0].mxu0 %v734
  %v817 = vpop.f32.mrb[0].mxu0
  %v818 = vadd.f32 0.0, %v817
  %v819 = vpop.f32.mrb[0].mxu0
  %820 = vdwg.mxu0
  %v822 = vsel %vm298, %v716, 0
  %v825 = vsel %vm298, %v717, 0
  %v828 = vsel %vm298, %v718, 0
  %v831 = vsel %vm298, %v719, 0
  %833 = vmatprep.subr.mxu0 0.0
  %834 = vmatpush1.msra.mxu0 %v803
  %835 = vmatprep.subr.mxu0 0.0
  %836 = vmatpush1.msra.mxu0 %v808
  %837 = vmatprep.subr.mxu0 0.0
  %838 = vmatpush1.msra.mxu0 %v813
  %839 = vmatprep.subr.mxu0 0.0
  %840 = vmatpush1.msra.mxu0 %v818
  %841 = vmatprep.subr.mxu0 0.0
  %842 = vmatpush1.msra.mxu0 0.0
  %843 = vmatprep.subr.mxu0 0.0
  %844 = vmatpush1.msra.mxu0 0.0
  %845 = vmatprep.subr.mxu0 0.0
  %846 = vmatpush1.msra.mxu0 0.0
  %847 = vmatprep.subr.mxu0 0.0
  %848 = vmatpush1.msra.mxu0 0.0
  %849 = vmatprep.subr.mxu0 0.0
  %850 = vmatpush1.msra.mxu0 0.0
  %851 = vmatprep.subr.mxu0 0.0
  %852 = vmatpush1.msra.mxu0 0.0
  %853 = vmatprep.subr.mxu0 0.0
  %854 = vmatpush1.msra.mxu0 0.0
  %855 = vmatprep.subr.mxu0 0.0
  %856 = vmatpush1.msra.mxu0 0.0
  %857 = vmatprep.subr.mxu0 0.0
  %858 = vmatpush1.msra.mxu0 0.0
  %859 = vmatprep.subr.mxu0 0.0
  %860 = vmatpush1.msra.mxu0 0.0
  %861 = vmatprep.subr.mxu0 0.0
  %862 = vmatpush1.msra.mxu0 0.0
  %863 = vmatprep.subr.mxu0 0.0
  %864 = vmatpush1.msra.mxu0 0.0
  %865 = vmatprep.subr.mxu0 0.0
  %866 = vmatpush1.msra.mxu0 0.0
  %867 = vmatprep.subr.mxu0 0.0
  %868 = vmatpush1.msra.mxu0 0.0
  %869 = vmatprep.subr.mxu0 0.0
  %870 = vmatpush1.msra.mxu0 0.0
  %871 = vmatprep.subr.mxu0 0.0
  %872 = vmatpush1.msra.mxu0 0.0
  %873 = vmatprep.subr.mxu0 0.0
  %874 = vmatpush1.msra.mxu0 0.0
  %875 = vmatprep.subr.mxu0 0.0
  %876 = vmatpush1.msra.mxu0 0.0
  %877 = vmatprep.subr.mxu0 0.0
  %878 = vmatpush1.msra.mxu0 0.0
  %879 = vmatprep.subr.mxu0 0.0
  %880 = vmatpush1.msra.mxu0 0.0
  %881 = vmatprep.subr.mxu0 0.0
  %882 = vmatpush1.msra.mxu0 0.0
  %883 = vmatprep.subr.mxu0 0.0
  %884 = vmatpush1.msra.mxu0 0.0
  %885 = vmatprep.subr.mxu0 0.0
  %886 = vmatpush1.msra.mxu0 0.0
  %887 = vmatprep.subr.mxu0 0.0
  %888 = vmatpush1.msra.mxu0 0.0
  %889 = vmatprep.subr.mxu0 0.0
  %890 = vmatpush1.msra.mxu0 0.0
  %891 = vmatprep.subr.mxu0 0.0
  %892 = vmatpush1.msra.mxu0 0.0
  %893 = vmatprep.subr.mxu0 0.0
  %894 = vmatpush1.msra.mxu0 0.0
  %895 = vmatprep.subr.mxu0 0.0
  %896 = vmatpush1.msra.mxu0 0.0
  %897 = vmatprep.mubr.f32.mxu0 0.0
  %898 = vmatmul.mubr.f32.gmra.mrb[0].mxu0 %v822
  %v899 = vpop.f32.mrb[0].mxu0
  %v900 = vadd.f32 0.0, %v899
  %v901 = vpop.f32.mrb[0].mxu0
  %902 = vmatprep.mubr.f32.mxu0 0.0
  %903 = vmatmul.mubr.f32.gmra.mrb[0].mxu0 %v825
  %v904 = vpop.f32.mrb[0].mxu0
  %v905 = vadd.f32 0.0, %v904
  %v906 = vpop.f32.mrb[0].mxu0
  %907 = vmatprep.mubr.f32.mxu0 0.0
  %908 = vmatmul.mubr.f32.gmra.mrb[0].mxu0 %v828
  %v909 = vpop.f32.mrb[0].mxu0
  %v910 = vadd.f32 0.0, %v909
  %v911 = vpop.f32.mrb[0].mxu0
  %912 = vmatprep.mubr.f32.mxu0 0.0
  %913 = vmatmul.mubr.f32.gmra.mrb[0].mxu0 %v831
  %v914 = vpop.f32.mrb[0].mxu0
  %v915 = vadd.f32 0.0, %v914
  %v916 = vpop.f32.mrb[0].mxu0
  %917 = vdwg.mxu0
  %v918 = vmax.f32 %v900, 0.0
  %v919 = vmax.f32 %v905, 0.0
  %v920 = vmax.f32 %v910, 0.0
  %v921 = vmax.f32 %v915, 0.0
  %v923 = vsel %vm298, %v918, 0
  %v926 = vsel %vm298, %v919, 0
  %v929 = vsel %vm298, %v920, 0
  %v932 = vsel %vm298, %v921, 0
  %934 = vmatprep.subr.mxu0 0.0
  %935 = vmatpush1.msra.mxu0 %v50
  %936 = vmatprep.subr.mxu0 0.0
  %937 = vmatpush1.msra.mxu0 %v51
  %938 = vmatprep.subr.mxu0 0.0
  %939 = vmatpush1.msra.mxu0 %v52
  %940 = vmatprep.subr.mxu0 0.0
  %941 = vmatpush1.msra.mxu0 %v53
  %942 = vmatprep.subr.mxu0 0.0
  %943 = vmatpush1.msra.mxu0 0.0
  %944 = vmatprep.subr.mxu0 0.0
  %945 = vmatpush1.msra.mxu0 0.0
  %946 = vmatprep.subr.mxu0 0.0
  %947 = vmatpush1.msra.mxu0 0.0
  %948 = vmatprep.subr.mxu0 0.0
  %949 = vmatpush1.msra.mxu0 0.0
  %950 = vmatprep.subr.mxu0 0.0
  %951 = vmatpush1.msra.mxu0 0.0
  %952 = vmatprep.subr.mxu0 0.0
  %953 = vmatpush1.msra.mxu0 0.0
  %954 = vmatprep.subr.mxu0 0.0
  %955 = vmatpush1.msra.mxu0 0.0
  %956 = vmatprep.subr.mxu0 0.0
  %957 = vmatpush1.msra.mxu0 0.0
  %958 = vmatprep.subr.mxu0 0.0
  %959 = vmatpush1.msra.mxu0 0.0
  %960 = vmatprep.subr.mxu0 0.0
  %961 = vmatpush1.msra.mxu0 0.0
  %962 = vmatprep.subr.mxu0 0.0
  %963 = vmatpush1.msra.mxu0 0.0
  %964 = vmatprep.subr.mxu0 0.0
  %965 = vmatpush1.msra.mxu0 0.0
  %966 = vmatprep.subr.mxu0 0.0
  %967 = vmatpush1.msra.mxu0 0.0
  %968 = vmatprep.subr.mxu0 0.0
  %969 = vmatpush1.msra.mxu0 0.0
  %970 = vmatprep.subr.mxu0 0.0
  %971 = vmatpush1.msra.mxu0 0.0
  %972 = vmatprep.subr.mxu0 0.0
  %973 = vmatpush1.msra.mxu0 0.0
  %974 = vmatprep.subr.mxu0 0.0
  %975 = vmatpush1.msra.mxu0 0.0
  %976 = vmatprep.subr.mxu0 0.0
  %977 = vmatpush1.msra.mxu0 0.0
  %978 = vmatprep.subr.mxu0 0.0
  %979 = vmatpush1.msra.mxu0 0.0
  %980 = vmatprep.subr.mxu0 0.0
  %981 = vmatpush1.msra.mxu0 0.0
  %982 = vmatprep.subr.mxu0 0.0
  %983 = vmatpush1.msra.mxu0 0.0
  %984 = vmatprep.subr.mxu0 0.0
  %985 = vmatpush1.msra.mxu0 0.0
  %986 = vmatprep.subr.mxu0 0.0
  %987 = vmatpush1.msra.mxu0 0.0
  %988 = vmatprep.subr.mxu0 0.0
  %989 = vmatpush1.msra.mxu0 0.0
  %990 = vmatprep.subr.mxu0 0.0
  %991 = vmatpush1.msra.mxu0 0.0
  %992 = vmatprep.subr.mxu0 0.0
  %993 = vmatpush1.msra.mxu0 0.0
  %994 = vmatprep.subr.mxu0 0.0
  %995 = vmatpush1.msra.mxu0 0.0
  %996 = vmatprep.subr.mxu0 0.0
  %997 = vmatpush1.msra.mxu0 0.0
  %998 = vmatprep.mubr.f32.mxu0 0.0
  %999 = vmatmul.mubr.f32.gmra.mrb[0].mxu0 %v923
  %v1000 = vpop.f32.mrb[0].mxu0
  %v1001 = vadd.f32 0.0, %v1000
  %v1002 = vpop.f32.mrb[0].mxu0
  %1003 = vmatprep.mubr.f32.mxu0 0.0
  %1004 = vmatmul.mubr.f32.gmra.mrb[0].mxu0 %v926
  %v1005 = vpop.f32.mrb[0].mxu0
  %v1006 = vadd.f32 0.0, %v1005
  %v1007 = vpop.f32.mrb[0].mxu0
  %1008 = vmatprep.mubr.f32.mxu0 0.0
  %1009 = vmatmul.mubr.f32.gmra.mrb[0].mxu0 %v929
  %v1010 = vpop.f32.mrb[0].mxu0
  %v1011 = vadd.f32 0.0, %v1010
  %v1012 = vpop.f32.mrb[0].mxu0
  %1013 = vmatprep.mubr.f32.mxu0 0.0
  %1014 = vmatmul.mubr.f32.gmra.mrb[0].mxu0 %v932
  %v1015 = vpop.f32.mrb[0].mxu0
  %v1016 = vadd.f32 0.0, %v1015
  %v1017 = vpop.f32.mrb[0].mxu0
  %1018 = vdwg.mxu0
  %1019 = vmatprep.subr.mxu0 0.0
  %1020 = vmatpush1.msra.mxu0 %v1001
  %1021 = vmatprep.subr.mxu0 0.0
  %1022 = vmatpush1.msra.mxu0 %v1006
  %1023 = vmatprep.subr.mxu0 0.0
  %1024 = vmatpush1.msra.mxu0 %v1011
  %1025 = vmatprep.subr.mxu0 0.0
  %1026 = vmatpush1.msra.mxu0 %v1016
  %1027 = vmatprep.subr.mxu0 0.0
  %1028 = vmatpush1.msra.mxu0 0.0
  %1029 = vmatprep.subr.mxu0 0.0
  %1030 = vmatpush1.msra.mxu0 0.0
  %1031 = vmatprep.subr.mxu0 0.0
  %1032 = vmatpush1.msra.mxu0 0.0
  %1033 = vmatprep.subr.mxu0 0.0
  %1034 = vmatpush1.msra.mxu0 0.0
  %1035 = vmatprep.subr.mxu0 0.0
  %1036 = vmatpush1.msra.mxu0 0.0
  %1037 = vmatprep.subr.mxu0 0.0
  %1038 = vmatpush1.msra.mxu0 0.0
  %1039 = vmatprep.subr.mxu0 0.0
  %1040 = vmatpush1.msra.mxu0 0.0
  %1041 = vmatprep.subr.mxu0 0.0
  %1042 = vmatpush1.msra.mxu0 0.0
  %1043 = vmatprep.subr.mxu0 0.0
  %1044 = vmatpush1.msra.mxu0 0.0
  %1045 = vmatprep.subr.mxu0 0.0
  %1046 = vmatpush1.msra.mxu0 0.0
  %1047 = vmatprep.subr.mxu0 0.0
  %1048 = vmatpush1.msra.mxu0 0.0
  %1049 = vmatprep.subr.mxu0 0.0
  %1050 = vmatpush1.msra.mxu0 0.0
  %1051 = vmatprep.subr.mxu0 0.0
  %1052 = vmatpush1.msra.mxu0 0.0
  %1053 = vmatprep.subr.mxu0 0.0
  %1054 = vmatpush1.msra.mxu0 0.0
  %1055 = vmatprep.subr.mxu0 0.0
  %1056 = vmatpush1.msra.mxu0 0.0
  %1057 = vmatprep.subr.mxu0 0.0
  %1058 = vmatpush1.msra.mxu0 0.0
  %1059 = vmatprep.subr.mxu0 0.0
  %1060 = vmatpush1.msra.mxu0 0.0
  %1061 = vmatprep.subr.mxu0 0.0
  %1062 = vmatpush1.msra.mxu0 0.0
  %1063 = vmatprep.subr.mxu0 0.0
  %1064 = vmatpush1.msra.mxu0 0.0
  %1065 = vmatprep.subr.mxu0 0.0
  %1066 = vmatpush1.msra.mxu0 0.0
  %1067 = vmatprep.subr.mxu0 0.0
  %1068 = vmatpush1.msra.mxu0 0.0
  %1069 = vmatprep.subr.mxu0 0.0
  %1070 = vmatpush1.msra.mxu0 0.0
  %1071 = vmatprep.subr.mxu0 0.0
  %1072 = vmatpush1.msra.mxu0 0.0
  %1073 = vmatprep.subr.mxu0 0.0
  %1074 = vmatpush1.msra.mxu0 0.0
  %1075 = vmatprep.subr.mxu0 0.0
  %1076 = vmatpush1.msra.mxu0 0.0
  %1077 = vmatprep.subr.mxu0 0.0
  %1078 = vmatpush1.msra.mxu0 0.0
  %1079 = vmatprep.subr.mxu0 0.0
  %1080 = vmatpush1.msra.mxu0 0.0
  %1081 = vmatprep.subr.mxu0 0.0
  %1082 = vmatpush1.msra.mxu0 0.0
  %1083 = vmatprep.mubr.f32.mxu0 0.0
  %1084 = vmatmul.mubr.f32.gmra.mrb[0].mxu0 %v822
  %v1085 = vpop.f32.mrb[0].mxu0
  %v1086 = vadd.f32 0.0, %v1085
  %v1087 = vpop.f32.mrb[0].mxu0
  %1088 = vmatprep.mubr.f32.mxu0 0.0
  %1089 = vmatmul.mubr.f32.gmra.mrb[0].mxu0 %v825
  %v1090 = vpop.f32.mrb[0].mxu0
  %v1091 = vadd.f32 0.0, %v1090
  %v1092 = vpop.f32.mrb[0].mxu0
  %1093 = vmatprep.mubr.f32.mxu0 0.0
  %1094 = vmatmul.mubr.f32.gmra.mrb[0].mxu0 %v828
  %v1095 = vpop.f32.mrb[0].mxu0
  %v1096 = vadd.f32 0.0, %v1095
  %v1097 = vpop.f32.mrb[0].mxu0
  %1098 = vmatprep.mubr.f32.mxu0 0.0
  %1099 = vmatmul.mubr.f32.gmra.mrb[0].mxu0 %v831
  %v1100 = vpop.f32.mrb[0].mxu0
  %v1101 = vadd.f32 0.0, %v1100
  %v1102 = vpop.f32.mrb[0].mxu0
  %1103 = vdwg.mxu0
  %v1104 = vsub.f32 0.0, %v1086
  %v1105 = vsub.f32 0.0, %v1091
  %v1106 = vsub.f32 0.0, %v1096
  %v1107 = vsub.f32 0.0, %v1101
  %v1108 = vmul.f32 %v1104, 1.442695
  %v1109 = vpow.pop %v1108
  %v1110 = vmul.f32 %v1105, 1.442695
  %v1111 = vpow.pop %v1110
  %v1112 = vmul.f32 %v1106, 1.442695
  %v1113 = vpow.pop %v1112
  %v1114 = vmul.f32 %v1107, 1.442695
  %v1115 = vpow.pop %v1114
  %v1116 = vadd.f32 %v1109, 1.0
  %v1117 = vadd.f32 %v1111, 1.0
  %v1118 = vadd.f32 %v1113, 1.0
  %v1119 = vadd.f32 %v1115, 1.0
  %v1120 = vrcp.pop %v1116
  %v1121 = vrcp.pop %v1117
  %v1122 = vrcp.pop %v1118
  %v1123 = vrcp.pop %v1119
  %v1124 = vld [vmem:[%s11] sm:$0xff]
  %v1125 = vld [vmem:[%s11 + $0x8] sm:$0xff]
  %v1126 = vld [vmem:[%s11 + $0x10] sm:$0xff]
  %v1127 = vld [vmem:[%s11 + $0x18] sm:$0xff]
  %v1128 = vld [vmem:[%s11 + $0x20] sm:$0xff]
  %v1129 = vld [vmem:[%s11 + $0x28] sm:$0xff]
  %v1130 = vld [vmem:[%s11 + $0x30] sm:$0xff]
  %v1131 = vld [vmem:[%s11 + $0x38] sm:$0xff]
  %v1132 = vld [vmem:[%s12] sm:$0x1]
  %vm1133 = vcmask 261127
  %1134 = vst.msk [vmem:[#allocation4 - $0x7] sm:$0x80] %vm1133, %v1120
  %1136 = vrot.lane.b32.xlu0 %v1120, 32
  %v1137 = vpop.permute.xlu0 %1136
  %vm1139 = vcmask 520452
  %1140 = vst.msk [vmem:[#allocation4 - $0x4] sm:$0x10] %vm1139, %v1137
  %vm1141 = vcmask 260102
  %1142 = vst.msk [vmem:[#allocation4 - $0x4] sm:$0x40] %vm1141, %v1122
  %1144 = vrot.lane.b32.xlu0 %v1122, 32
  %v1145 = vpop.permute.xlu0 %1144
  %vm1147 = vcmask 523527
  %1148 = vst.msk [vmem:[#allocation4 - $0x5] sm:$0x80] %vm1147, %v1145
  %1149 = vst.msk [vmem:[#allocation4 - $0x6] sm:$0x80] %vm1133, %v1121
  %1151 = vrot.lane.b32.xlu0 %v1121, 32
  %v1152 = vpop.permute.xlu0 %1151
  %1154 = vst.msk [vmem:[#allocation4 - $0x3] sm:$0x10] %vm1139, %v1152
  %1155 = vst.msk [vmem:[#allocation4 - $0x3] sm:$0x40] %vm1141, %v1123
  %1157 = vrot.lane.b32.xlu0 %v1123, 32
  %v1158 = vpop.permute.xlu0 %1157
  %1160 = vst.msk [vmem:[#allocation4 - $0x4] sm:$0x80] %vm1147, %v1158
  %v1161 = vld [vmem:[#allocation4] sm:$0xf]
  %v1163 = vlaneseq
  %v1164 = vshrl.u32 %v1163, 7
  %v1165 = vsub.s32 0, %v1164
  %v1166 = vrot.slane %v1132, %v1165
  %vm1168 = vcmask 523264
  %v1170 = vsel %vm1168, %v1161, 0
  %1172 = vmatprep.subr.mxu0 0.0
  %1173 = vmatpush1.msra.mxu0 %v1124
  %1174 = vmatprep.subr.mxu0 0.0
  %1175 = vmatpush1.msra.mxu0 %v1125
  %1176 = vmatprep.subr.mxu0 0.0
  %1177 = vmatpush1.msra.mxu0 %v1126
  %1178 = vmatprep.subr.mxu0 0.0
  %1179 = vmatpush1.msra.mxu0 %v1127
  %1180 = vmatprep.subr.mxu0 0.0
  %1181 = vmatpush1.msra.mxu0 %v1128
  %1182 = vmatprep.subr.mxu0 0.0
  %1183 = vmatpush1.msra.mxu0 %v1129
  %1184 = vmatprep.subr.mxu0 0.0
  %1185 = vmatpush1.msra.mxu0 %v1130
  %1186 = vmatprep.subr.mxu0 0.0
  %1187 = vmatpush1.msra.mxu0 %v1131
  %1188 = vmatprep.subr.mxu0 0.0
  %1189 = vmatpush1.msra.mxu0 0.0
  %1190 = vmatprep.subr.mxu0 0.0
  %1191 = vmatpush1.msra.mxu0 0.0
  %1192 = vmatprep.subr.mxu0 0.0
  %1193 = vmatpush1.msra.mxu0 0.0
  %1194 = vmatprep.subr.mxu0 0.0
  %1195 = vmatpush1.msra.mxu0 0.0
  %1196 = vmatprep.subr.mxu0 0.0
  %1197 = vmatpush1.msra.mxu0 0.0
  %1198 = vmatprep.subr.mxu0 0.0
  %1199 = vmatpush1.msra.mxu0 0.0
  %1200 = vmatprep.subr.mxu0 0.0
  %1201 = vmatpush1.msra.mxu0 0.0
  %1202 = vmatprep.subr.mxu0 0.0
  %1203 = vmatpush1.msra.mxu0 0.0
  %1204 = vmatprep.subr.mxu0 0.0
  %1205 = vmatpush1.msra.mxu0 0.0
  %1206 = vmatprep.subr.mxu0 0.0
  %1207 = vmatpush1.msra.mxu0 0.0
  %1208 = vmatprep.subr.mxu0 0.0
  %1209 = vmatpush1.msra.mxu0 0.0
  %1210 = vmatprep.subr.mxu0 0.0
  %1211 = vmatpush1.msra.mxu0 0.0
  %1212 = vmatprep.subr.mxu0 0.0
  %1213 = vmatpush1.msra.mxu0 0.0
  %1214 = vmatprep.subr.mxu0 0.0
  %1215 = vmatpush1.msra.mxu0 0.0
  %1216 = vmatprep.subr.mxu0 0.0
  %1217 = vmatpush1.msra.mxu0 0.0
  %1218 = vmatprep.subr.mxu0 0.0
  %1219 = vmatpush1.msra.mxu0 0.0
  %1220 = vmatprep.subr.mxu0 0.0
  %1221 = vmatpush1.msra.mxu0 0.0
  %1222 = vmatprep.subr.mxu0 0.0
  %1223 = vmatpush1.msra.mxu0 0.0
  %1224 = vmatprep.subr.mxu0 0.0
  %1225 = vmatpush1.msra.mxu0 0.0
  %1226 = vmatprep.subr.mxu0 0.0
  %1227 = vmatpush1.msra.mxu0 0.0
  %1228 = vmatprep.subr.mxu0 0.0
  %1229 = vmatpush1.msra.mxu0 0.0
  %1230 = vmatprep.subr.mxu0 0.0
  %1231 = vmatpush1.msra.mxu0 0.0
  %1232 = vmatprep.subr.mxu0 0.0
  %1233 = vmatpush1.msra.mxu0 0.0
  %1234 = vmatprep.subr.mxu0 0.0
  %1235 = vmatpush1.msra.mxu0 0.0
  %1236 = vmatprep.mubr.f32.mxu0 0.0
  %1237 = vmatmul.mubr.f32.gmra.mrb[0].mxu0 %v1170
  %v1238 = vpop.f32.mrb[0].mxu0
  %v1239 = vadd.f32 %v1166, %v1238
  %v1240 = vpop.f32.mrb[0].mxu0
  %1241 = vdwg.mxu0
  %vm1242 = vcmask 158720
  %1243 = vst.msk [vmem:[%s14] sm:$0xf] %vm1242, %v1239
  // Predicated region
  $region54: #{decoder_forward.1} parent=0 // pred_check
    _
  $region55: #{decoder_forward.1} parent=0 // pred_check_branch
    %1245 = sbr.rel (0) target = $region57
  $region56: #{decoder_forward.1} parent=0 // pred_region
    _
  $region57: #{decoder_forward.1} parent=0 // pred_fallthru
    _
  // Predicated region
  $region58: #{decoder_forward.1} parent=0 // pred_check
    _
  $region59: #{decoder_forward.1} parent=0 // pred_check_branch
    %1247 = sbr.rel (0) target = $region61
  $region60: #{decoder_forward.1} parent=0 // pred_region
    _
  $region61: #{decoder_forward.1} parent=0 // pred_fallthru
    _
  // Predicated region
  $region62: #{decoder_forward.1} parent=0 // pred_check
    _
  $region63: #{decoder_forward.1} parent=0 // pred_check_branch
    %1249 = sbr.rel (0) target = $region65
  $region64: #{decoder_forward.1} parent=0 // pred_region
    _
  $region65: #{decoder_forward.1} parent=0 // pred_fallthru
    _
  // Predicated region
  $region66: #{decoder_forward.1} parent=0 // pred_check
    _
  $region67: #{decoder_forward.1} parent=0 // pred_check_branch
    %1251 = sbr.rel (0) target = $region69
  $region68: #{decoder_forward.1} parent=0 // pred_region
    _
  $region69: #{decoder_forward.1} parent=0 // pred_fallthru
    _

</llo_original>
